<compile_context>
chip_gen: v6e
topology: v6e:2x2x1
jax: 0.10.0
libtpu: 0.0.40
codegen_flags: <defaults>
</compile_context>

<pallas_src>
import numpy as np
import jax
import jax.numpy as jnp
from jax.experimental import pallas as pl
from jax.experimental.pallas import tpu as pltpu

# ---------------- configuration (small but consistent with the module) ------
WX, WY = 4, 4                      # window_size_x, window_size_y
N_TOK = WX * WY                    # 16 tokens
TOKEN_DIM = 128                    # token_dim
QKV_DIM = 128                      # qkv_dim
NUM_HEADS = 4
HEAD_DIM = QKV_DIM // NUM_HEADS    # 32
NORM_ATTN = float(HEAD_DIM) ** 0.5
LN_EPS = 1e-5
BATCH = 16

# ----- packed-parameter slab layouts (row offsets multiples of 16 for bf16) --
# bf16 slab, 256 lanes wide
_R_WVQK = 0                        # rows [  0,128): [w_v | w_qk]   (acts on LN(x))
_R_BVQK = TOKEN_DIM                # row  128      : [b_v | b_qk]
_R_WSEL = 144                      # rows [144,272): [w_qk | w_skip] (acts on selected token)
_R_BSEL = _R_WSEL + TOKEN_DIM      # row  272      : [b_qk | b_skip]
W256_ROWS = 288

# bf16 slab, 128 lanes wide
_R_P = 0                           # rows [  0,128): block-diag head mask / sqrt(head_dim)
_R_WOF = QKV_DIM                   # rows [128,256): fused out_proj @ fc_final (lane-padded)
_R_BOF = 2 * QKV_DIM               # row  256      : fused bias
W128_ROWS = 264

# f32 misc slab, 128 lanes wide
_R_SCORER = 0
_R_LNG = 1
_R_LNB = 2
_R_BTAB = 8                        # rows [8,24): positional-bias table (lane-padded)
MISC_ROWS = _R_BTAB + N_TOK        # 24


def _relative_indexes(wx, wy):
    """Exactly reproduces MultiHeadRelevantTokenAttention.create_positional_biases."""
    mesh = np.meshgrid(range(wx), range(wy), indexing="ij")
    indices = np.stack(mesh, axis=-1).reshape(-1, 2)
    rel = indices[:, None, :] - indices[None, :, :]
    rel = rel.reshape(-1, 2)
    uniq = np.unique(rel, axis=0)
    pos_dict = {tuple(p): i for i, p in enumerate(uniq)}
    rel_idx = np.array([pos_dict[tuple(p)] for p in rel]).reshape(wx * wy, wx * wy)
    return rel_idx, len(pos_dict)


# ---------------------------- the Pallas kernel ------------------------------
def mhrta_kernel(x_ref, w256_ref, w128_ref, misc_ref, out_ref):
    x = x_ref[...]                                    # (BT, N, D) f32
    BT, N, D = x.shape
    Q = QKV_DIM

    # ---- grid-invariant parameters (static, tile-aligned slices) ----
    w_vqk = w256_ref[_R_WVQK:_R_WVQK + D, :]          # (D, 2Q) bf16: [w_v | w_qk]
    b_vqk = w256_ref[_R_BVQK:_R_BVQK + 1, :].astype(jnp.float32)
    w_sel = w256_ref[_R_WSEL:_R_WSEL + D, :]          # (D, 2Q) bf16: [w_qk | w_skip]
    b_sel = w256_ref[_R_BSEL:_R_BSEL + 1, :].astype(jnp.float32)
    p_scaled = w128_ref[_R_P:_R_P + Q, :]             # (Q, Q) bf16
    w_of = w128_ref[_R_WOF:_R_WOF + Q, :]             # (Q, Q) bf16
    b_of = w128_ref[_R_BOF:_R_BOF + 1, :].astype(jnp.float32)
    vecs = misc_ref[0:8, :]                           # (8, Q) f32 (aligned load)
    scorer_w = vecs[_R_SCORER:_R_SCORER + 1, :]
    ln_g = vecs[_R_LNG:_R_LNG + 1, :]
    ln_b = vecs[_R_LNB:_R_LNB + 1, :]
    btab = misc_ref[_R_BTAB:_R_BTAB + N_TOK, :]       # (N, Q) f32, lanes >= N are 0

    # ---- RelevantTokenSelector (eval: first-occurrence argmax) ----
    # Scorer bias omitted: argmax is invariant to a constant offset.  Kept as an
    # f32 lane-reduce: an MXU formulation would force the argmax/one-hot work
    # into a lane-replicated layout (~5x more VALU than the reduce it removes).
    logits = jnp.sum(x * scorer_w.reshape(1, 1, D), axis=-1)      # (BT, N)
    mx = jnp.max(logits, axis=-1, keepdims=True)
    iota = jax.lax.broadcasted_iota(jnp.int32, (BT, N), 1)
    idx = jnp.min(jnp.where(logits == mx, iota, N), axis=-1, keepdims=True)
    onehot = (iota == idx).astype(jnp.float32)                    # (BT, N) one-hot

    # ---- LayerNorm over token_dim (f32 elementwise) ----
    x2 = x.reshape(BT * N, D)
    mu = jnp.mean(x2, axis=-1, keepdims=True)
    xc = x2 - mu
    var = jnp.mean(xc * xc, axis=-1, keepdims=True)
    x_norm = xc * jax.lax.rsqrt(var + LN_EPS) * ln_g + ln_b       # (BT*N, D)

    # ---- value | key projection: single (BT*N, D) @ (D, 2Q) bf16 MXU GEMM ----
    proj = jnp.dot(x_norm.astype(jnp.bfloat16), w_vqk,
                   preferred_element_type=jnp.float32) + b_vqk
    value3 = proj[:, 0:Q].reshape(BT, N, Q)                       # v(LN(x))
    key3 = proj[:, Q:2 * Q].reshape(BT, N, Q)                     # qk(LN(x))

    # ---- select the relevant raw token, then project it (query / skip) ----
    # "Select then project" == "project then select" for row-wise linear ops.
    oh3 = onehot[:, :, None]                                      # (BT, N, 1)
    x_sel = jnp.sum(oh3 * x, axis=1)                              # (BT, D)
    mu_s = jnp.mean(x_sel, axis=-1, keepdims=True)
    xc_s = x_sel - mu_s
    var_s = jnp.mean(xc_s * xc_s, axis=-1, keepdims=True)
    x_sel_norm = xc_s * jax.lax.rsqrt(var_s + LN_EPS) * ln_g + ln_b
    query = jnp.dot(x_sel_norm.astype(jnp.bfloat16), w_sel[:, 0:Q],
                    preferred_element_type=jnp.float32) + b_sel[:, 0:Q]   # qk(LN(sel))
    skip = jnp.dot(x_sel.astype(jnp.bfloat16), w_sel[:, Q:2 * Q],
                   preferred_element_type=jnp.float32) + b_sel[:, Q:2 * Q]  # skip(sel)

    # ---- per-head scores, lane-dense: (key*query) @ block-diag(1/sqrt(hd)) ----
    prod = (key3 * query[:, None, :]).reshape(BT * N, Q)
    scores = jnp.dot(prod.astype(jnp.bfloat16), p_scaled,
                     preferred_element_type=jnp.float32).reshape(BT, N, Q)

    # Relative positional bias of the selected token (tiny one-hot gather).
    # TODO(synk): PyTorch's literal `attn + bias` broadcast is only shape-valid
    # when B == num_heads; we implement the intended per-batch broadcast over
    # heads (numerically identical here since unique_bias_param is zero-init).
    bias_lane = jnp.dot(onehot, btab, preferred_element_type=jnp.float32)  # (BT, Q)
    scores = scores + bias_lane[:, 0:N][:, :, None]   # 2-vreg lane->sublane move

    # ---- softmax over tokens (sublane axis); reciprocal goes to the EUP ----
    m = jnp.max(scores, axis=1, keepdims=True)
    e = jnp.exp(scores - m)
    attn = e * pl.reciprocal(jnp.sum(e, axis=1, keepdims=True), approx=True)

    # ---- weighted value sum, residual skip, relu ----
    y = jnp.sum(attn * value3, axis=1)                            # (BT, Q)
    y = jnp.maximum(y + skip, 0.0)
    # final_dropout(p=0.5) is identity in eval mode; top_k is None (default).

    # ---- fused out_proj @ fc_final (lane-padded); lane-dense 2-D store ----
    out_ref[...] = jnp.dot(y.astype(jnp.bfloat16), w_of,
                           preferred_element_type=jnp.float32) + b_of


# ----------------------- wrapper-side parameter packing ----------------------
def pack_params(params):
    D, Q = TOKEN_DIM, QKV_DIM
    f = lambda k: np.asarray(params[k], np.float32)

    # bf16 slab 1 (256 lanes): value|key projection + selected-token projection
    w256 = np.zeros((W256_ROWS, 2 * Q), np.float32)
    w256[_R_WVQK:_R_WVQK + D, 0:Q] = f("w_v")
    w256[_R_WVQK:_R_WVQK + D, Q:2 * Q] = f("w_qk")
    w256[_R_BVQK, 0:Q] = f("b_v")[0]
    w256[_R_BVQK, Q:2 * Q] = f("b_qk")[0]
    w256[_R_WSEL:_R_WSEL + D, 0:Q] = f("w_qk")
    w256[_R_WSEL:_R_WSEL + D, Q:2 * Q] = f("w_skip")
    w256[_R_BSEL, 0:Q] = f("b_qk")[0]
    w256[_R_BSEL, Q:2 * Q] = f("b_skip")[0]

    # bf16 slab 2 (128 lanes): block-diag head mask + fused out_proj@fc_final
    lane = np.arange(Q)
    p_scaled = (lane[:, None] // HEAD_DIM == lane[None, :] // HEAD_DIM)
    p_scaled = p_scaled.astype(np.float32) / NORM_ATTN
    w_fc_pad = np.zeros((Q, Q), np.float32)
    w_fc_pad[:, 0:2] = f("w_fc")
    b_fc_pad = np.zeros((Q,), np.float32)
    b_fc_pad[0:2] = f("b_fc")[0]
    w_of = f("w_out") @ w_fc_pad
    b_of = f("b_out")[0] @ w_fc_pad + b_fc_pad
    w128 = np.zeros((W128_ROWS, Q), np.float32)
    w128[_R_P:_R_P + Q] = p_scaled
    w128[_R_WOF:_R_WOF + Q] = w_of
    w128[_R_BOF] = b_of

    # f32 misc slab (128 lanes): scorer, LayerNorm affine, positional-bias table
    misc = np.zeros((MISC_ROWS, Q), np.float32)
    misc[_R_SCORER] = f("scorer_w")[0]
    misc[_R_LNG] = f("ln_g")[0]
    misc[_R_LNB] = f("ln_b")[0]
    misc[_R_BTAB:_R_BTAB + N_TOK, 0:N_TOK] = f("bias_table")

    return (jnp.asarray(w256, dtype=jnp.bfloat16),
            jnp.asarray(w128, dtype=jnp.bfloat16),
            jnp.asarray(misc, dtype=jnp.float32))


def _pick_b_tile(B):
    """Largest multiple-of-8 divisor of B up to 256 (fits a ~48 MiB VMEM budget
    on v5e/v6e/v7x); halved once if that would leave a single grid step so
    dimension_semantics=("parallel",) can use both v7x TensorCores."""
    if B % 8 != 0:
        return B                       # tiny / odd batches: single tile
    t = 8
    for cand in range(8, min(B, 256) + 1, 8):
        if B % cand == 0:
            t = cand
    if B // t == 1 and t % 16 == 0:
        t //= 2
    return t


def mhrta_forward(x, w256, w128, misc, *, b_tile=None):
    """x: (B, Wx, Wy, token_dim) float32 -> (B, 2) float32."""
    B = x.shape[0]
    if b_tile is None:
        b_tile = _pick_b_tile(B)
    assert B % b_tile == 0
    x3 = x.reshape(B, N_TOK, TOKEN_DIM)

    out = pl.pallas_call(
        mhrta_kernel,
        out_shape=jax.ShapeDtypeStruct((B, QKV_DIM), jnp.float32),
        grid=(B // b_tile,),
        in_specs=[
            pl.BlockSpec((b_tile, N_TOK, TOKEN_DIM), lambda b: (b, 0, 0)),
            # Grid-invariant weight slabs (constant index_map -> fetched once).
            # TODO(synk): pipeline_mode=pl.Buffered(1) here would reclaim ~0.3 MiB
            # of redundant double-buffer residency at the v7x VMEM limit.
            pl.BlockSpec((W256_ROWS, 2 * QKV_DIM), lambda b: (0, 0)),
            pl.BlockSpec((W128_ROWS, QKV_DIM), lambda b: (0, 0)),
            pl.BlockSpec((MISC_ROWS, QKV_DIM), lambda b: (0, 0)),
        ],
        out_specs=pl.BlockSpec((b_tile, QKV_DIM), lambda b: (b, 0)),
        compiler_params=pltpu.CompilerParams(
            dimension_semantics=("parallel",),
            # above the 16/32 MiB scoped defaults, below v7x's 64 MiB physical VMEM
            vmem_limit_bytes=48 * 1024 * 1024,
        ),
    )(x3, w256, w128, misc)
    # lane-dense, zero-padded output: the two real logits live in lanes [0, 2)
    return out[:, 0:2]


# ------------------------- pure-JAX reference (for checking) ----------------
def mhrta_reference(x, p):
    B = x.shape[0]
    x3 = x.reshape(B, -1, TOKEN_DIM)
    logits = jnp.sum(x3 * p["scorer_w"][0][None, None, :], axis=-1) + p["scorer_b"][0, 0]
    idx = jnp.argmax(logits, axis=-1)
    sel = x3[jnp.arange(B), idx]

    def ln(t):
        mu = t.mean(-1, keepdims=True)
        var = ((t - mu) ** 2).mean(-1, keepdims=True)
        return (t - mu) / jnp.sqrt(var + LN_EPS) * p["ln_g"][0] + p["ln_b"][0]

    xn, seln = ln(x3), ln(sel)
    value = xn @ p["w_v"] + p["b_v"][0]
    key = xn @ p["w_qk"] + p["b_qk"][0]
    query = seln @ p["w_qk"] + p["b_qk"][0]
    skip = sel @ p["w_skip"] + p["b_skip"][0]

    q4 = query.reshape(B, NUM_HEADS, HEAD_DIM)
    k4 = key.reshape(B, -1, NUM_HEADS, HEAD_DIM).transpose(0, 2, 1, 3)
    v4 = value.reshape(B, -1, NUM_HEADS, HEAD_DIM).transpose(0, 2, 1, 3)
    attn = jnp.einsum("bhd,bhjd->bhj", q4, k4) / NORM_ATTN
    bias = p["bias_table"][idx]                      # (B, N): intended broadcast
    attn = jax.nn.softmax(attn + bias[:, None, :], axis=-1)
    y = jnp.einsum("bhj,bhjd->bhd", attn, v4).reshape(B, -1)
    y = jax.nn.relu(y + skip)
    y = y @ p["w_out"] + p["b_out"][0]
    y = y @ p["w_fc"] + p["b_fc"][0]
    return y


# --------------------------------- main --------------------------------------
if __name__ == "__main__":
    key = jax.random.PRNGKey(0)
    keys = jax.random.split(key, 16)
    scale = 0.05

    rel_idx, n_unique = _relative_indexes(WX, WY)
    unique_bias_param = jnp.zeros((n_unique,), jnp.float32)       # module zero-inits
    bias_table = unique_bias_param[jnp.asarray(rel_idx)]          # (N, N)

    params = {
        "scorer_w": jax.random.normal(keys[0], (1, TOKEN_DIM), jnp.float32) * scale,
        "scorer_b": jax.random.normal(keys[1], (1, 1), jnp.float32) * scale,
        "ln_g": jnp.ones((1, TOKEN_DIM), jnp.float32),
        "ln_b": jnp.zeros((1, TOKEN_DIM), jnp.float32),
        "w_qk": jax.random.normal(keys[2], (TOKEN_DIM, QKV_DIM), jnp.float32) * scale,
        "b_qk": jax.random.normal(keys[3], (1, QKV_DIM), jnp.float32) * scale,
        "w_v": jax.random.normal(keys[4], (TOKEN_DIM, QKV_DIM), jnp.float32) * scale,
        "b_v": jax.random.normal(keys[5], (1, QKV_DIM), jnp.float32) * scale,
        "w_skip": jax.random.normal(keys[6], (TOKEN_DIM, QKV_DIM), jnp.float32) * scale,
        "b_skip": jax.random.normal(keys[7], (1, QKV_DIM), jnp.float32) * scale,
        "bias_table": bias_table.astype(jnp.float32),
        "w_out": jax.random.normal(keys[8], (QKV_DIM, QKV_DIM), jnp.float32) * scale,
        "b_out": jax.random.normal(keys[9], (1, QKV_DIM), jnp.float32) * scale,
        "w_fc": jax.random.normal(keys[10], (QKV_DIM, 2), jnp.float32) * scale,
        "b_fc": jax.random.normal(keys[11], (1, 2), jnp.float32) * scale,
    }

    x = jax.random.normal(keys[12], (BATCH, WX, WY, TOKEN_DIM), jnp.float32)

    w256, w128, misc = pack_params(params)

    out = jax.jit(mhrta_forward)(x, w256, w128, misc)
    out = jax.block_until_ready(out)

    ref = mhrta_reference(x, params)
    # bf16 MXU operands with f32 accumulation: relaxed tolerance vs f32 reference.
    np.testing.assert_allclose(np.asarray(out), np.asarray(ref), rtol=2e-2, atol=2e-2)

    print("KERNEL_OK")
</pallas_src>

<mosaic_0001>
module attributes {stable_mosaic.version = 11 : i64} {
  func.func @mhrta_kernel(%arg0: i32, %arg1: memref<8x16x128xf32, #tpu.memory_space<vmem>>, %arg2: memref<288x256xbf16, #tpu.memory_space<vmem>>, %arg3: memref<264x128xbf16, #tpu.memory_space<vmem>>, %arg4: memref<24x128xf32, #tpu.memory_space<vmem>>, %arg5: memref<8x128xf32, #tpu.memory_space<vmem>>) attributes {dimension_semantics = [#tpu.dimension_semantics<parallel>], iteration_bounds = array<i64: 2>, scalar_prefetch = 0 : i64, scratch_operands = 0 : i64, tpu.core_type = #tpu.core_type<tc>, window_params = [{transform_indices = @transform_0, window_bounds = array<i64: 8, 16, 128>}, {pipeline_mode = #tpu.pipeline_mode<synchronous>, transform_indices = @transform_1, window_bounds = array<i64: 288, 256>}, {pipeline_mode = #tpu.pipeline_mode<synchronous>, transform_indices = @transform_2, window_bounds = array<i64: 264, 128>}, {pipeline_mode = #tpu.pipeline_mode<synchronous>, transform_indices = @transform_3, window_bounds = array<i64: 24, 128>}, {transform_indices = @transform_4, window_bounds = array<i64: 8, 128>}]} {
    %c0 = arith.constant 0 : index
    %c0_0 = arith.constant 0 : index
    %c0_1 = arith.constant 0 : index
    %0 = vector.load %arg1[%c0, %c0_0, %c0_1] : memref<8x16x128xf32, #tpu.memory_space<vmem>>, vector<8x16x128xf32>
    %c0_2 = arith.constant 0 : index
    %c0_3 = arith.constant 0 : index
    %1 = vector.load %arg2[%c0_2, %c0_3] : memref<288x256xbf16, #tpu.memory_space<vmem>>, vector<128x256xbf16>
    %c128 = arith.constant 128 : index
    %c0_4 = arith.constant 0 : index
    %2 = vector.load %arg2[%c128, %c0_4] : memref<288x256xbf16, #tpu.memory_space<vmem>>, vector<1x256xbf16>
    %3 = arith.extf %2 : vector<1x256xbf16> to vector<1x256xf32>
    %c144 = arith.constant 144 : index
    %c0_5 = arith.constant 0 : index
    %4 = vector.load %arg2[%c144, %c0_5] : memref<288x256xbf16, #tpu.memory_space<vmem>>, vector<128x256xbf16>
    %c272 = arith.constant 272 : index
    %c0_6 = arith.constant 0 : index
    %5 = vector.load %arg2[%c272, %c0_6] : memref<288x256xbf16, #tpu.memory_space<vmem>>, vector<1x256xbf16>
    %6 = arith.extf %5 : vector<1x256xbf16> to vector<1x256xf32>
    %c0_7 = arith.constant 0 : index
    %c0_8 = arith.constant 0 : index
    %7 = vector.load %arg3[%c0_7, %c0_8] : memref<264x128xbf16, #tpu.memory_space<vmem>>, vector<128x128xbf16>
    %c128_9 = arith.constant 128 : index
    %c0_10 = arith.constant 0 : index
    %8 = vector.load %arg3[%c128_9, %c0_10] : memref<264x128xbf16, #tpu.memory_space<vmem>>, vector<128x128xbf16>
    %c256 = arith.constant 256 : index
    %c0_11 = arith.constant 0 : index
    %9 = vector.load %arg3[%c256, %c0_11] : memref<264x128xbf16, #tpu.memory_space<vmem>>, vector<1x128xbf16>
    %10 = arith.extf %9 : vector<1x128xbf16> to vector<1x128xf32>
    %c0_12 = arith.constant 0 : index
    %c0_13 = arith.constant 0 : index
    %11 = vector.load %arg4[%c0_12, %c0_13] : memref<24x128xf32, #tpu.memory_space<vmem>>, vector<8x128xf32>
    %12 = vector.extract_strided_slice %11 {offsets = [0, 0], sizes = [1, 128], strides = [1, 1]} : vector<8x128xf32> to vector<1x128xf32>
    %13 = vector.extract_strided_slice %11 {offsets = [1, 0], sizes = [1, 128], strides = [1, 1]} : vector<8x128xf32> to vector<1x128xf32>
    %14 = vector.extract_strided_slice %11 {offsets = [2, 0], sizes = [1, 128], strides = [1, 1]} : vector<8x128xf32> to vector<1x128xf32>
    %c8 = arith.constant 8 : index
    %c0_14 = arith.constant 0 : index
    %15 = vector.load %arg4[%c8, %c0_14] : memref<24x128xf32, #tpu.memory_space<vmem>>, vector<16x128xf32>
    %16 = vector.shape_cast %12 : vector<1x128xf32> to vector<1x1x128xf32>
    %17 = vector.broadcast %16 : vector<1x1x128xf32> to vector<8x16x128xf32>
    %18 = arith.mulf %0, %17 : vector<8x16x128xf32>
    %cst = arith.constant dense<0.000000e+00> : vector<8x16xf32>
    %19 = vector.multi_reduction <add>, %18, %cst [2] : vector<8x16x128xf32> to vector<8x16xf32>
    %cst_15 = arith.constant dense<0xFF800000> : vector<8xf32>
    %20 = vector.multi_reduction <maximumf>, %19, %cst_15 [1] : vector<8x16xf32> to vector<8xf32>
    %21 = vector.shape_cast %20 : vector<8xf32> to vector<8x1xf32>
    %22 = tpu.iota {dimensions = array<i32: 1>} : vector<8x16xi32>
    %23 = vector.broadcast %21 : vector<8x1xf32> to vector<8x16xf32>
    %24 = arith.cmpf oeq, %19, %23 : vector<8x16xf32>
    %c16_i32 = arith.constant 16 : i32
    %25 = vector.broadcast %c16_i32 : i32 to vector<8x16xi32>
    %26 = arith.select %24, %22, %25 : vector<8x16xi1>, vector<8x16xi32>
    %cst_16 = arith.constant dense<2147483647> : vector<8xi32>
    %27 = vector.multi_reduction <minsi>, %26, %cst_16 [1] : vector<8x16xi32> to vector<8xi32>
    %28 = vector.shape_cast %27 : vector<8xi32> to vector<8x1xi32>
    %29 = vector.broadcast %28 : vector<8x1xi32> to vector<8x16xi32>
    %30 = arith.cmpi eq, %22, %29 : vector<8x16xi32>
    %31 = arith.extui %30 : vector<8x16xi1> to vector<8x16xi32>
    %32 = arith.sitofp %31 : vector<8x16xi32> to vector<8x16xf32>
    %33 = vector.shape_cast %0 : vector<8x16x128xf32> to vector<128x128xf32>
    %cst_17 = arith.constant dense<0.000000e+00> : vector<128xf32>
    %34 = vector.multi_reduction <add>, %33, %cst_17 [1] : vector<128x128xf32> to vector<128xf32>
    %35 = vector.shape_cast %34 : vector<128xf32> to vector<128x1xf32>
    %cst_18 = arith.constant 1.280000e+02 : f32
    %36 = vector.broadcast %cst_18 : f32 to vector<128x1xf32>
    %37 = arith.divf %35, %36 : vector<128x1xf32>
    %38 = vector.broadcast %37 : vector<128x1xf32> to vector<128x128xf32>
    %39 = arith.subf %33, %38 : vector<128x128xf32>
    %40 = arith.mulf %39, %39 : vector<128x128xf32>
    %cst_19 = arith.constant dense<0.000000e+00> : vector<128xf32>
    %41 = vector.multi_reduction <add>, %40, %cst_19 [1] : vector<128x128xf32> to vector<128xf32>
    %42 = vector.shape_cast %41 : vector<128xf32> to vector<128x1xf32>
    %cst_20 = arith.constant 1.280000e+02 : f32
    %43 = vector.broadcast %cst_20 : f32 to vector<128x1xf32>
    %44 = arith.divf %42, %43 : vector<128x1xf32>
    %cst_21 = arith.constant 9.99999974E-6 : f32
    %45 = vector.broadcast %cst_21 : f32 to vector<128x1xf32>
    %46 = arith.addf %44, %45 : vector<128x1xf32>
    %47 = math.rsqrt %46 : vector<128x1xf32>
    %48 = vector.broadcast %47 : vector<128x1xf32> to vector<128x128xf32>
    %49 = arith.mulf %39, %48 : vector<128x128xf32>
    %50 = vector.broadcast %13 : vector<1x128xf32> to vector<128x128xf32>
    %51 = arith.mulf %49, %50 : vector<128x128xf32>
    %52 = vector.broadcast %14 : vector<1x128xf32> to vector<128x128xf32>
    %53 = arith.addf %51, %52 : vector<128x128xf32>
    %54 = arith.truncf %53 : vector<128x128xf32> to vector<128x128xbf16>
    %cst_22 = arith.constant dense<0.000000e+00> : vector<128x256xf32>
    %55 = tpu.matmul %54, %1, %cst_22 {dimension_numbers = #tpu.dot_dimension_numbers<[1], [0], [0], [1], [0, 0, 1, 1], [], []>} : vector<128x128xbf16>, vector<128x256xbf16>, vector<128x256xf32> -> vector<128x256xf32>
    %56 = vector.broadcast %3 : vector<1x256xf32> to vector<128x256xf32>
    %57 = arith.addf %55, %56 : vector<128x256xf32>
    %58 = vector.extract_strided_slice %57 {offsets = [0, 0], sizes = [128, 128], strides = [1, 1]} : vector<128x256xf32> to vector<128x128xf32>
    %59 = vector.shape_cast %58 : vector<128x128xf32> to vector<8x16x128xf32>
    %60 = vector.extract_strided_slice %57 {offsets = [0, 128], sizes = [128, 128], strides = [1, 1]} : vector<128x256xf32> to vector<128x128xf32>
    %61 = vector.shape_cast %60 : vector<128x128xf32> to vector<8x16x128xf32>
    %62 = vector.shape_cast %32 : vector<8x16xf32> to vector<8x16x1xf32>
    %63 = vector.broadcast %62 : vector<8x16x1xf32> to vector<8x16x128xf32>
    %64 = arith.mulf %63, %0 : vector<8x16x128xf32>
    %cst_23 = arith.constant dense<0.000000e+00> : vector<8x128xf32>
    %65 = vector.multi_reduction <add>, %64, %cst_23 [1] : vector<8x16x128xf32> to vector<8x128xf32>
    %cst_24 = arith.constant dense<0.000000e+00> : vector<8xf32>
    %66 = vector.multi_reduction <add>, %65, %cst_24 [1] : vector<8x128xf32> to vector<8xf32>
    %67 = vector.shape_cast %66 : vector<8xf32> to vector<8x1xf32>
    %cst_25 = arith.constant 1.280000e+02 : f32
    %68 = vector.broadcast %cst_25 : f32 to vector<8x1xf32>
    %69 = arith.divf %67, %68 : vector<8x1xf32>
    %70 = vector.broadcast %69 : vector<8x1xf32> to vector<8x128xf32>
    %71 = arith.subf %65, %70 : vector<8x128xf32>
    %72 = arith.mulf %71, %71 : vector<8x128xf32>
    %cst_26 = arith.constant dense<0.000000e+00> : vector<8xf32>
    %73 = vector.multi_reduction <add>, %72, %cst_26 [1] : vector<8x128xf32> to vector<8xf32>
    %74 = vector.shape_cast %73 : vector<8xf32> to vector<8x1xf32>
    %cst_27 = arith.constant 1.280000e+02 : f32
    %75 = vector.broadcast %cst_27 : f32 to vector<8x1xf32>
    %76 = arith.divf %74, %75 : vector<8x1xf32>
    %cst_28 = arith.constant 9.99999974E-6 : f32
    %77 = vector.broadcast %cst_28 : f32 to vector<8x1xf32>
    %78 = arith.addf %76, %77 : vector<8x1xf32>
    %79 = math.rsqrt %78 : vector<8x1xf32>
    %80 = vector.broadcast %79 : vector<8x1xf32> to vector<8x128xf32>
    %81 = arith.mulf %71, %80 : vector<8x128xf32>
    %82 = vector.broadcast %13 : vector<1x128xf32> to vector<8x128xf32>
    %83 = arith.mulf %81, %82 : vector<8x128xf32>
    %84 = vector.broadcast %14 : vector<1x128xf32> to vector<8x128xf32>
    %85 = arith.addf %83, %84 : vector<8x128xf32>
    %86 = arith.truncf %85 : vector<8x128xf32> to vector<8x128xbf16>
    %87 = vector.extract_strided_slice %4 {offsets = [0, 0], sizes = [128, 128], strides = [1, 1]} : vector<128x256xbf16> to vector<128x128xbf16>
    %cst_29 = arith.constant dense<0.000000e+00> : vector<8x128xf32>
    %88 = tpu.matmul %86, %87, %cst_29 {dimension_numbers = #tpu.dot_dimension_numbers<[1], [0], [0], [1], [0, 0, 1, 1], [], []>} : vector<8x128xbf16>, vector<128x128xbf16>, vector<8x128xf32> -> vector<8x128xf32>
    %89 = vector.extract_strided_slice %6 {offsets = [0, 0], sizes = [1, 128], strides = [1, 1]} : vector<1x256xf32> to vector<1x128xf32>
    %90 = vector.broadcast %89 : vector<1x128xf32> to vector<8x128xf32>
    %91 = arith.addf %88, %90 : vector<8x128xf32>
    %92 = arith.truncf %65 : vector<8x128xf32> to vector<8x128xbf16>
    %93 = vector.extract_strided_slice %4 {offsets = [0, 128], sizes = [128, 128], strides = [1, 1]} : vector<128x256xbf16> to vector<128x128xbf16>
    %cst_30 = arith.constant dense<0.000000e+00> : vector<8x128xf32>
    %94 = tpu.matmul %92, %93, %cst_30 {dimension_numbers = #tpu.dot_dimension_numbers<[1], [0], [0], [1], [0, 0, 1, 1], [], []>} : vector<8x128xbf16>, vector<128x128xbf16>, vector<8x128xf32> -> vector<8x128xf32>
    %95 = vector.extract_strided_slice %6 {offsets = [0, 128], sizes = [1, 128], strides = [1, 1]} : vector<1x256xf32> to vector<1x128xf32>
    %96 = vector.broadcast %95 : vector<1x128xf32> to vector<8x128xf32>
    %97 = arith.addf %94, %96 : vector<8x128xf32>
    %98 = vector.shape_cast %91 : vector<8x128xf32> to vector<8x1x128xf32>
    %99 = vector.broadcast %98 : vector<8x1x128xf32> to vector<8x16x128xf32>
    %100 = arith.mulf %61, %99 : vector<8x16x128xf32>
    %101 = vector.shape_cast %100 : vector<8x16x128xf32> to vector<128x128xf32>
    %102 = arith.truncf %101 : vector<128x128xf32> to vector<128x128xbf16>
    %cst_31 = arith.constant dense<0.000000e+00> : vector<128x128xf32>
    %103 = tpu.matmul %102, %7, %cst_31 {dimension_numbers = #tpu.dot_dimension_numbers<[1], [0], [0], [1], [0, 0, 1, 1], [], []>} : vector<128x128xbf16>, vector<128x128xbf16>, vector<128x128xf32> -> vector<128x128xf32>
    %104 = vector.shape_cast %103 : vector<128x128xf32> to vector<8x16x128xf32>
    %cst_32 = arith.constant dense<0.000000e+00> : vector<8x128xf32>
    %105 = tpu.matmul %32, %15, %cst_32 {dimension_numbers = #tpu.dot_dimension_numbers<[1], [0], [0], [1], [0, 0, 1, 1], [], []>} : vector<8x16xf32>, vector<16x128xf32>, vector<8x128xf32> -> vector<8x128xf32>
    %106 = vector.extract_strided_slice %105 {offsets = [0, 0], sizes = [8, 16], strides = [1, 1]} : vector<8x128xf32> to vector<8x16xf32>
    %107 = vector.shape_cast %106 : vector<8x16xf32> to vector<8x16x1xf32>
    %108 = vector.broadcast %107 : vector<8x16x1xf32> to vector<8x16x128xf32>
    %109 = arith.addf %104, %108 : vector<8x16x128xf32>
    %cst_33 = arith.constant dense<0xFF800000> : vector<8x128xf32>
    %110 = vector.multi_reduction <maximumf>, %109, %cst_33 [1] : vector<8x16x128xf32> to vector<8x128xf32>
    %111 = vector.shape_cast %110 : vector<8x128xf32> to vector<8x1x128xf32>
    %112 = vector.broadcast %111 : vector<8x1x128xf32> to vector<8x16x128xf32>
    %113 = arith.subf %109, %112 : vector<8x16x128xf32>
    %114 = math.exp %113 : vector<8x16x128xf32>
    %cst_34 = arith.constant dense<0.000000e+00> : vector<8x128xf32>
    %115 = vector.multi_reduction <add>, %114, %cst_34 [1] : vector<8x16x128xf32> to vector<8x128xf32>
    %116 = vector.shape_cast %115 : vector<8x128xf32> to vector<8x1x128xf32>
    %117 = tpu.reciprocal %116 {approx = true} : vector<8x1x128xf32> -> vector<8x1x128xf32>
    %118 = vector.broadcast %117 : vector<8x1x128xf32> to vector<8x16x128xf32>
    %119 = arith.mulf %114, %118 : vector<8x16x128xf32>
    %120 = arith.mulf %119, %59 : vector<8x16x128xf32>
    %cst_35 = arith.constant dense<0.000000e+00> : vector<8x128xf32>
    %121 = vector.multi_reduction <add>, %120, %cst_35 [1] : vector<8x16x128xf32> to vector<8x128xf32>
    %122 = arith.addf %121, %97 : vector<8x128xf32>
    %cst_36 = arith.constant 0.000000e+00 : f32
    %123 = vector.broadcast %cst_36 : f32 to vector<8x128xf32>
    %124 = arith.maximumf %122, %123 : vector<8x128xf32>
    %125 = arith.truncf %124 : vector<8x128xf32> to vector<8x128xbf16>
    %cst_37 = arith.constant dense<0.000000e+00> : vector<8x128xf32>
    %126 = tpu.matmul %125, %8, %cst_37 {dimension_numbers = #tpu.dot_dimension_numbers<[1], [0], [0], [1], [0, 0, 1, 1], [], []>} : vector<8x128xbf16>, vector<128x128xbf16>, vector<8x128xf32> -> vector<8x128xf32>
    %127 = vector.broadcast %10 : vector<1x128xf32> to vector<8x128xf32>
    %128 = arith.addf %126, %127 : vector<8x128xf32>
    %c0_38 = arith.constant 0 : index
    %c0_39 = arith.constant 0 : index
    %129 = vector.load %arg5[%c0_38, %c0_39] : memref<8x128xf32, #tpu.memory_space<vmem>>, vector<8x128xf32>
    tpu.vector_store %arg5[%c0_38, %c0_39], %128 {strides = array<i32>} : memref<8x128xf32, #tpu.memory_space<vmem>>, vector<8x128xf32>,
    return
  }
  func.func @transform_0(%arg0: i32) -> (i32, i32, i32) {
    %c0_i32 = arith.constant 0 : i32
    %c0_i32_0 = arith.constant 0 : i32
    %c0_i32_1 = arith.constant 0 : i32
    return %arg0, %c0_i32, %c0_i32_0 : i32, i32, i32
  }
  func.func @transform_1(%arg0: i32) -> (i32, i32) {
    %c0_i32 = arith.constant 0 : i32
    %c0_i32_0 = arith.constant 0 : i32
    %c0_i32_1 = arith.constant 0 : i32
    return %c0_i32, %c0_i32_0 : i32, i32
  }
  func.func @transform_2(%arg0: i32) -> (i32, i32) {
    %c0_i32 = arith.constant 0 : i32
    %c0_i32_0 = arith.constant 0 : i32
    %c0_i32_1 = arith.constant 0 : i32
    return %c0_i32, %c0_i32_0 : i32, i32
  }
  func.func @transform_3(%arg0: i32) -> (i32, i32) {
    %c0_i32 = arith.constant 0 : i32
    %c0_i32_0 = arith.constant 0 : i32
    %c0_i32_1 = arith.constant 0 : i32
    return %c0_i32, %c0_i32_0 : i32, i32
  }
  func.func @transform_4(%arg0: i32) -> (i32, i32) {
    %c0_i32 = arith.constant 0 : i32
    %c0_i32_0 = arith.constant 0 : i32
    return %arg0, %c0_i32 : i32, i32
  }
}

</mosaic_0001>

<llo_original>
// kernel: mhrta_forward.1
$region0: #{mhrta_forward.1}
  #allocation0 [shape = 'u32[]', space=smem, size = 0x4, offset = 0x4, fixed_abs, tag = 'smem constant byte address 0x4 - core index']
  #allocation1 [shape = 'u32[144,128]{1,0:T(1,128)}', space=vmem, size = 0x12000, scoped, tag = 'internal scratch']
  %s0 = inlined_call_operand.hbm [shape: f32[16,16,128], index: 0, kind: input, shape index: {}]
  %s1 = inlined_call_operand.hbm [shape: bf16[288,256], index: 1, kind: input, shape index: {}]
  %s2 = inlined_call_operand.hbm [shape: bf16[264,128], index: 2, kind: input, shape index: {}]
  %s3 = inlined_call_operand.hbm [shape: f32[24,128], index: 3, kind: input, shape index: {}]
  %s4 = inlined_call_operand.vmem [shape: f32[16,128], index: 4, kind: output, shape index: {}]
  %s5 = sld [smem:[#allocation0]]
  $region65: #{mhrta_forward.1} parent=0
    _
  %s7 = ssub.s32 1, %s5
  %s8 = scalar_select 0, %s7, %s5
  $region1: #{mhrta_forward.1} parent=0
    #allocation2 [shape = 'u8[131072]{0}', space=vmem, size = 0x20000, scoped, tag = 'input window, operand 0']
    #allocation3 [shape = 's32[2]{0}', space=sflag, size = 0x8, scoped, tag = 'scoped memory for mhrta_forward.1']
    #allocation4 [shape = 'u8[147456]{0}', space=vmem, size = 0x24000, scoped, tag = 'input window, operand 1, single buffered']
    #allocation5 [shape = 's32[1]{0}', space=sflag, size = 0x4, scoped, tag = 'scoped memory for mhrta_forward.1']
    #allocation6 [shape = 'u8[67584]{0}', space=vmem, size = 0x10800, scoped, tag = 'input window, operand 2, single buffered']
    #allocation7 [shape = 'u8[12288]{0}', space=vmem, size = 0x3000, scoped, tag = 'input window, operand 3, single buffered']
    #allocation8 [shape = 's32[1]{0}', space=sflag, size = 0x4, scoped, tag = 'scoped memory for mhrta_forward.1']
    %9 = vsyncpa [#allocation3], 0
    %s10 = scalar_lea.sflag [#allocation3], 1
    %11 = vsyncpa %s10, 0
    %12 = vsyncpa [#allocation5], 0
    %13 = vsyncpa [#allocation8], 0
    loop: start=0, step=1, limit=4
    $region2: #{mhrta_forward.1} parent=1 // loop_pre_header
      _
    $region3: #{mhrta_forward.1} parent=1 // loop_header
      %s15 = sphi 0, %s19
      %p16 = scmp.ge.s32.totalorder %s15, 4
      %s25 = sphi 0, %s27
      %s28 = sphi 0, %s25
      %s29 = sphi 0, %s28
      %s45 = sphi 0, %s29
      %s49 = sphi 0, %s49
      %s51 = sphi 0, %s49
      %s52 = sphi 0, %s51
      %s66 = sphi 0, %s52
      %s70 = sphi 0, %s70
      %s72 = sphi 0, %s70
      %s73 = sphi 0, %s72
      %s87 = sphi 0, %s73
      %s91 = sphi 0, %s91
      %s93 = sphi 0, %s91
      %s94 = sphi 0, %s93
      %s108 = sphi 0, %s94
      %s114 = sphi 0, %s116
      %s117 = sphi 0, %s114
      %s118 = sphi 0, %s117
      %s134 = sphi 0, %s118
    $region4: #{mhrta_forward.1} parent=1 // loop_header_branch
      %18 = sbr.rel (%p16) target = $region8
    $region5: #{mhrta_forward.1} parent=1 // loop_body
      %s20 = ssub.s32 %s15, 1
      %s21 = ssub.s32 %s15, 2
      %s22 = sadd.s32 %s15, 1
      %s23 = ssub.s32 %s15, %s22
      %p24 = scmp.eq.s32.totalorder %s23, 0
      %s26 = sadd.s32 %s25, 1
      %s27 = scalar_select %p24, %s25, %s26
      %p30 = pneg %p24
      %p31 = scmp.eq.s32.totalorder %s15, 1
      %p32 = por %p30, %p31
      %p33 = scmp.ne.s32.totalorder %s25, %s28
      %p34 = scmp.eq.s32.totalorder %s15, 0
      %p35 = por %p33, %p34
      %p36 = scmp.ne.s32.totalorder %s25, %s28
      %p37 = scmp.eq.s32.totalorder %s20, 1
      %p38 = por %p36, %p37
      %p39 = scmp.ne.s32.totalorder %s28, %s29
      %p40 = scmp.eq.s32.totalorder %s20, 0
      %p41 = por %p39, %p40
      %p42 = scmp.ne.s32.totalorder %s28, %s29
      %p43 = scmp.eq.s32.totalorder %s21, 1
      %p44 = por %p42, %p43
      %p46 = scmp.ne.s32.totalorder %s29, %s45
      %p47 = scmp.eq.s32.totalorder %s21, 0
      %p48 = por %p46, %p47
      %s50 = sadd.s32 %s49, 1
      %p53 = scmp.eq.s32.totalorder %s15, 1
      %p54 = scmp.ne.s32.totalorder %s49, %s51
      %p55 = scmp.eq.s32.totalorder %s15, 0
      %p56 = por %p54, %p55
      %p57 = scmp.ne.s32.totalorder %s49, %s51
      %p58 = scmp.eq.s32.totalorder %s20, 1
      %p59 = por %p57, %p58
      %p60 = scmp.ne.s32.totalorder %s51, %s52
      %p61 = scmp.eq.s32.totalorder %s20, 0
      %p62 = por %p60, %p61
      %p63 = scmp.ne.s32.totalorder %s51, %s52
      %p64 = scmp.eq.s32.totalorder %s21, 1
      %p65 = por %p63, %p64
      %p67 = scmp.ne.s32.totalorder %s52, %s66
      %p68 = scmp.eq.s32.totalorder %s21, 0
      %p69 = por %p67, %p68
      %s71 = sadd.s32 %s70, 1
      %p74 = scmp.eq.s32.totalorder %s15, 1
      %p75 = scmp.ne.s32.totalorder %s70, %s72
      %p76 = scmp.eq.s32.totalorder %s15, 0
      %p77 = por %p75, %p76
      %p78 = scmp.ne.s32.totalorder %s70, %s72
      %p79 = scmp.eq.s32.totalorder %s20, 1
      %p80 = por %p78, %p79
      %p81 = scmp.ne.s32.totalorder %s72, %s73
      %p82 = scmp.eq.s32.totalorder %s20, 0
      %p83 = por %p81, %p82
      %p84 = scmp.ne.s32.totalorder %s72, %s73
      %p85 = scmp.eq.s32.totalorder %s21, 1
      %p86 = por %p84, %p85
      %p88 = scmp.ne.s32.totalorder %s73, %s87
      %p89 = scmp.eq.s32.totalorder %s21, 0
      %p90 = por %p88, %p89
      %s92 = sadd.s32 %s91, 1
      %p95 = scmp.eq.s32.totalorder %s15, 1
      %p96 = scmp.ne.s32.totalorder %s91, %s93
      %p97 = scmp.eq.s32.totalorder %s15, 0
      %p98 = por %p96, %p97
      %p99 = scmp.ne.s32.totalorder %s91, %s93
      %p100 = scmp.eq.s32.totalorder %s20, 1
      %p101 = por %p99, %p100
      %p102 = scmp.ne.s32.totalorder %s93, %s94
      %p103 = scmp.eq.s32.totalorder %s20, 0
      %p104 = por %p102, %p103
      %p105 = scmp.ne.s32.totalorder %s93, %s94
      %p106 = scmp.eq.s32.totalorder %s21, 1
      %p107 = por %p105, %p106
      %p109 = scmp.ne.s32.totalorder %s94, %s108
      %p110 = scmp.eq.s32.totalorder %s21, 0
      %p111 = por %p109, %p110
      %s112 = ssub.s32 %s15, %s22
      %p113 = scmp.eq.s32.totalorder %s112, 0
      %s115 = sadd.s32 %s114, 1
      %s116 = scalar_select %p113, %s114, %s115
      %p119 = pneg %p113
      %p120 = scmp.eq.s32.totalorder %s15, 1
      %p121 = por %p119, %p120
      %p122 = scmp.ne.s32.totalorder %s114, %s117
      %p123 = scmp.eq.s32.totalorder %s15, 0
      %p124 = por %p122, %p123
      %p125 = scmp.ne.s32.totalorder %s114, %s117
      %p126 = scmp.eq.s32.totalorder %s20, 1
      %p127 = por %p125, %p126
      %p128 = scmp.ne.s32.totalorder %s117, %s118
      %p129 = scmp.eq.s32.totalorder %s20, 0
      %p130 = por %p128, %p129
      %p131 = scmp.ne.s32.totalorder %s117, %s118
      %p132 = scmp.eq.s32.totalorder %s21, 1
      %p133 = por %p131, %p132
      %p135 = scmp.ne.s32.totalorder %s118, %s134
      %p136 = scmp.eq.s32.totalorder %s21, 0
      %p137 = por %p135, %p136
      %p138 = scmp.le.s32.totalorder 1, %s15
      %p139 = scmp.lt.s32.totalorder %s15, 3
      %p140 = pnand %p138, %p139
      %p141 = pneg %p140
      // Predicated region
      $region9: #{mhrta_forward.1} parent=5 // pred_check
        _
      $region10: #{mhrta_forward.1} parent=5 // pred_check_branch
        %143 = sbr.rel (%p140) target = $region12
      $region11: #{mhrta_forward.1} parent=5 // pred_region
        %s144 = ssub.s32 %s15, 1
        // Predicated region
        $region13: #{mhrta_forward.1} parent=11 // pred_check
          %p145 = pneg %p62
        $region14: #{mhrta_forward.1} parent=11 // pred_check_branch
          %147 = sbr.rel (%p145) target = $region16
        $region15: #{mhrta_forward.1} parent=11 // pred_region
          %s149 = ssub.s32 4608, 4608
          %150 = vsyncadd [#allocation5], %s149
          %s151 = sshll.u32 [#allocation4], 4
          %s152 = int_to_ptr.vmem [resolvable:$true] %s151
          %157 = dma.hbm_to_vmem [thread:$0]  %s1, 4608, %s152, [#allocation5], 128, 128, 8
        $region16: #{mhrta_forward.1} parent=11 // pred_fallthru
          _
        // Predicated region
        $region17: #{mhrta_forward.1} parent=11 // pred_check
          %p158 = pneg %p83
        $region18: #{mhrta_forward.1} parent=11 // pred_check_branch
          %160 = sbr.rel (%p158) target = $region20
        $region19: #{mhrta_forward.1} parent=11 // pred_region
          %s162 = ssub.s32 2112, 2112
          %163 = vsyncadd [#allocation5], %s162
          %s164 = sshll.u32 [#allocation6], 4
          %s165 = int_to_ptr.vmem [resolvable:$true] %s164
          %170 = dma.hbm_to_vmem [thread:$0]  %s2, 2112, %s165, [#allocation5], 64, 64, 4
        $region20: #{mhrta_forward.1} parent=11 // pred_fallthru
          _
        // Predicated region
        $region21: #{mhrta_forward.1} parent=11 // pred_check
          %p171 = pneg %p104
        $region22: #{mhrta_forward.1} parent=11 // pred_check_branch
          %173 = sbr.rel (%p171) target = $region24
        $region23: #{mhrta_forward.1} parent=11 // pred_region
          %s175 = ssub.s32 384, 384
          %176 = vsyncadd [#allocation8], %s175
          %s177 = sshll.u32 [#allocation7], 4
          %s178 = int_to_ptr.vmem [resolvable:$true] %s177
          %183 = dma.hbm_to_vmem [thread:$0]  %s3, 384, %s178, [#allocation8], 128, 128, 8
        $region24: #{mhrta_forward.1} parent=11 // pred_fallthru
          _
      $region12: #{mhrta_forward.1} parent=5 // pred_fallthru
        _
      %p184 = scmp.lt.s32.totalorder %s15, 2
      // Predicated region
      $region25: #{mhrta_forward.1} parent=5 // pred_check
        %p185 = pneg %p184
      $region26: #{mhrta_forward.1} parent=5 // pred_check_branch
        %187 = sbr.rel (%p185) target = $region28
      $region27: #{mhrta_forward.1} parent=5 // pred_region
        // Predicated region
        $region29: #{mhrta_forward.1} parent=27 // pred_check
          %p188 = pneg %p35
        $region30: #{mhrta_forward.1} parent=27 // pred_check_branch
          %190 = sbr.rel (%p188) target = $region32
        $region31: #{mhrta_forward.1} parent=27 // pred_region
          %s191 = sand.u32 %s25, 1
          %s192 = scalar_lea.sflag [#allocation3], %s191
          %s193 = sand.u32 %s25, 1
          %s194 = smul.addr %s193, 128
          %s195 = scalar_lea.vmem [#allocation2], %s194
          %s196 = smul.u32 8, %s15
          %s198 = ssub.s32 2048, 2048
          %199 = vsyncadd %s192, %s198
          %s200 = smul.addr %s196, 2
          %s201 = smul.addr %s200, 128
          %s202 = scalar_lea.hbm %s0, %s201
          %s203 = sshll.u32 %s195, 4
          %s204 = int_to_ptr.vmem [resolvable:$true] %s203
          %209 = dma.hbm_to_vmem [thread:$0]  %s202, 2048, %s204, %s192, 128, 128, 8
        $region32: #{mhrta_forward.1} parent=27 // pred_fallthru
          _
      $region28: #{mhrta_forward.1} parent=5 // pred_fallthru
        _
      %p210 = scmp.le.s32.totalorder 1, %s15
      %p211 = scmp.lt.s32.totalorder %s15, 3
      %p212 = pnand %p210, %p211
      %p213 = pneg %p212
      // Predicated region
      $region33: #{mhrta_forward.1} parent=5 // pred_check
        _
      $region34: #{mhrta_forward.1} parent=5 // pred_check_branch
        %215 = sbr.rel (%p212) target = $region36
      $region35: #{mhrta_forward.1} parent=5 // pred_region
        %s216 = ssub.s32 %s15, 1
        %s217 = sand.u32 %s28, 1
        %s218 = scalar_lea.sflag [#allocation3], %s217
        %s219 = sand.u32 %s28, 1
        %s220 = smul.addr %s219, 128
        %s221 = scalar_lea.vmem [#allocation2], %s220
        // Predicated region
        $region37: #{mhrta_forward.1} parent=35 // pred_check
          %p222 = pneg %p41
        $region38: #{mhrta_forward.1} parent=35 // pred_check_branch
          %224 = sbr.rel (%p222) target = $region40
        $region39: #{mhrta_forward.1} parent=35 // pred_region
          %225 = dma.done %s218, 2048
        $region40: #{mhrta_forward.1} parent=35 // pred_fallthru
          _
        // Predicated region
        $region41: #{mhrta_forward.1} parent=35 // pred_check
          %p226 = pneg %p62
        $region42: #{mhrta_forward.1} parent=35 // pred_check_branch
          %228 = sbr.rel (%p226) target = $region44
        $region43: #{mhrta_forward.1} parent=35 // pred_region
          %229 = dma.done [#allocation5], 4608
        $region44: #{mhrta_forward.1} parent=35 // pred_fallthru
          _
        // Predicated region
        $region45: #{mhrta_forward.1} parent=35 // pred_check
          %p230 = pneg %p83
        $region46: #{mhrta_forward.1} parent=35 // pred_check_branch
          %232 = sbr.rel (%p230) target = $region48
        $region47: #{mhrta_forward.1} parent=35 // pred_region
          %233 = dma.done [#allocation5], 2112
        $region48: #{mhrta_forward.1} parent=35 // pred_fallthru
          _
        // Predicated region
        $region49: #{mhrta_forward.1} parent=35 // pred_check
          %p234 = pneg %p104
        $region50: #{mhrta_forward.1} parent=35 // pred_check_branch
          %236 = sbr.rel (%p234) target = $region52
        $region51: #{mhrta_forward.1} parent=35 // pred_region
          %237 = dma.done [#allocation8], 384
        $region52: #{mhrta_forward.1} parent=35 // pred_fallthru
          _
        %s238 = sand.u32 %s28, 1
        %s239 = scalar_lea.sflag [#allocation3], %s238
        %s240 = sand.u32 %s28, 1
        %s241 = smul.addr %s240, 128
        %s242 = scalar_lea.vmem [#allocation2], %s241
        %p243 = pneg %p41
        %p244 = pneg %p38
        %p245 = pneg %p62
        %p246 = pneg %p59
        %p247 = pneg %p83
        %p248 = pneg %p80
        %p249 = pneg %p104
        %p250 = pneg %p101
        %p251 = pneg %p130
        %p252 = pneg %p127
        %p253 = scmp.lt.s32.totalorder %s20, 1
        %s254 = scalar_select %p253, %s20, 1
        %s255 = smul.addr %s254, 8
        %s256 = scalar_lea.vmem %s4, %s255
        %s257 = smul.u32 8, %s20
        %p258 = scmp.lt.s32.totalorder %s20, 1
        %s259 = scalar_select %p258, %s20, 1
        %s260 = smul.addr %s259, 8
        %s261 = scalar_lea.vmem %s4, %s260
        %v263 = vld [vmem:[%s221] sm:$0xff]
        %v264 = vld [vmem:[%s221 + $0x8] sm:$0xff]
        %v265 = vld [vmem:[%s221 + $0x10] sm:$0xff]
        %v266 = vld [vmem:[%s221 + $0x18] sm:$0xff]
        %v267 = vld [vmem:[%s221 + $0x20] sm:$0xff]
        %v268 = vld [vmem:[%s221 + $0x28] sm:$0xff]
        %v269 = vld [vmem:[%s221 + $0x30] sm:$0xff]
        %v270 = vld [vmem:[%s221 + $0x38] sm:$0xff]
        %v271 = vld [vmem:[%s221 + $0x40] sm:$0xff]
        %v272 = vld [vmem:[%s221 + $0x48] sm:$0xff]
        %v273 = vld [vmem:[%s221 + $0x50] sm:$0xff]
        %v274 = vld [vmem:[%s221 + $0x58] sm:$0xff]
        %v275 = vld [vmem:[%s221 + $0x60] sm:$0xff]
        %v276 = vld [vmem:[%s221 + $0x68] sm:$0xff]
        %v277 = vld [vmem:[%s221 + $0x70] sm:$0xff]
        %v278 = vld [vmem:[%s221 + $0x78] sm:$0xff]
        %v279 = vld [vmem:[#allocation4] sm:$0xff]
        %v280 = vld [vmem:[#allocation4 + $0x8] sm:$0xff]
        %v281 = vld [vmem:[#allocation4 + $0x10] sm:$0xff]
        %v282 = vld [vmem:[#allocation4 + $0x18] sm:$0xff]
        %v283 = vld [vmem:[#allocation4 + $0x20] sm:$0xff]
        %v284 = vld [vmem:[#allocation4 + $0x28] sm:$0xff]
        %v285 = vld [vmem:[#allocation4 + $0x30] sm:$0xff]
        %v286 = vld [vmem:[#allocation4 + $0x38] sm:$0xff]
        %v287 = vld [vmem:[#allocation4 + $0x40] sm:$0xff]
        %v288 = vld [vmem:[#allocation4 + $0x48] sm:$0xff]
        %v289 = vld [vmem:[#allocation4 + $0x50] sm:$0xff]
        %v290 = vld [vmem:[#allocation4 + $0x58] sm:$0xff]
        %v291 = vld [vmem:[#allocation4 + $0x60] sm:$0xff]
        %v292 = vld [vmem:[#allocation4 + $0x68] sm:$0xff]
        %v293 = vld [vmem:[#allocation4 + $0x70] sm:$0xff]
        %v294 = vld [vmem:[#allocation4 + $0x78] sm:$0xff]
        %v295 = vld [vmem:[#allocation4 + $0x80] sm:$0x11]
        %v296 = vunpack.c.l.bf16 %v295
        %v297 = vunpack.c.h.bf16 %v295
        %v298 = vld [vmem:[#allocation4 + $0x90] sm:$0xff]
        %v299 = vld [vmem:[#allocation4 + $0x98] sm:$0xff]
        %v300 = vld [vmem:[#allocation4 + $0xa0] sm:$0xff]
        %v301 = vld [vmem:[#allocation4 + $0xa8] sm:$0xff]
        %v302 = vld [vmem:[#allocation4 + $0xb0] sm:$0xff]
        %v303 = vld [vmem:[#allocation4 + $0xb8] sm:$0xff]
        %v304 = vld [vmem:[#allocation4 + $0xc0] sm:$0xff]
        %v305 = vld [vmem:[#allocation4 + $0xc8] sm:$0xff]
        %v306 = vld [vmem:[#allocation4 + $0xd0] sm:$0xff]
        %v307 = vld [vmem:[#allocation4 + $0xd8] sm:$0xff]
        %v308 = vld [vmem:[#allocation4 + $0xe0] sm:$0xff]
        %v309 = vld [vmem:[#allocation4 + $0xe8] sm:$0xff]
        %v310 = vld [vmem:[#allocation4 + $0xf0] sm:$0xff]
        %v311 = vld [vmem:[#allocation4 + $0xf8] sm:$0xff]
        %v312 = vld [vmem:[#allocation4 + $0x100] sm:$0xff]
        %v313 = vld [vmem:[#allocation4 + $0x108] sm:$0xff]
        %v314 = vld [vmem:[#allocation4 + $0x110] sm:$0x11]
        %v315 = vunpack.c.l.bf16 %v314
        %v316 = vunpack.c.h.bf16 %v314
        %v317 = vld [vmem:[#allocation6] sm:$0xf]
        %v318 = vld [vmem:[#allocation6 + $0x4] sm:$0xf]
        %v319 = vld [vmem:[#allocation6 + $0x8] sm:$0xf]
        %v320 = vld [vmem:[#allocation6 + $0xc] sm:$0xf]
        %v321 = vld [vmem:[#allocation6 + $0x10] sm:$0xf]
        %v322 = vld [vmem:[#allocation6 + $0x14] sm:$0xf]
        %v323 = vld [vmem:[#allocation6 + $0x18] sm:$0xf]
        %v324 = vld [vmem:[#allocation6 + $0x1c] sm:$0xf]
        %v325 = vld [vmem:[#allocation6 + $0x20] sm:$0xf]
        %v326 = vld [vmem:[#allocation6 + $0x24] sm:$0xf]
        %v327 = vld [vmem:[#allocation6 + $0x28] sm:$0xf]
        %v328 = vld [vmem:[#allocation6 + $0x2c] sm:$0xf]
        %v329 = vld [vmem:[#allocation6 + $0x30] sm:$0xf]
        %v330 = vld [vmem:[#allocation6 + $0x34] sm:$0xf]
        %v331 = vld [vmem:[#allocation6 + $0x38] sm:$0xf]
        %v332 = vld [vmem:[#allocation6 + $0x3c] sm:$0xf]
        %v333 = vld [vmem:[#allocation6 + $0x40] sm:$0xf]
        %v334 = vld [vmem:[#allocation6 + $0x44] sm:$0xf]
        %v335 = vld [vmem:[#allocation6 + $0x48] sm:$0xf]
        %v336 = vld [vmem:[#allocation6 + $0x4c] sm:$0xf]
        %v337 = vld [vmem:[#allocation6 + $0x50] sm:$0xf]
        %v338 = vld [vmem:[#allocation6 + $0x54] sm:$0xf]
        %v339 = vld [vmem:[#allocation6 + $0x58] sm:$0xf]
        %v340 = vld [vmem:[#allocation6 + $0x5c] sm:$0xf]
        %v341 = vld [vmem:[#allocation6 + $0x60] sm:$0xf]
        %v342 = vld [vmem:[#allocation6 + $0x64] sm:$0xf]
        %v343 = vld [vmem:[#allocation6 + $0x68] sm:$0xf]
        %v344 = vld [vmem:[#allocation6 + $0x6c] sm:$0xf]
        %v345 = vld [vmem:[#allocation6 + $0x70] sm:$0xf]
        %v346 = vld [vmem:[#allocation6 + $0x74] sm:$0xf]
        %v347 = vld [vmem:[#allocation6 + $0x78] sm:$0xf]
        %v348 = vld [vmem:[#allocation6 + $0x7c] sm:$0xf]
        %v349 = vld [vmem:[#allocation6 + $0x80] sm:$0x1]
        %v350 = vunpack.c.l.bf16 %v349
        %v351 = vld [vmem:[#allocation7] sm:$0xff]
        %v352 = vld [vmem:[#allocation7 + $0x8] sm:$0xff]
        %v353 = vld [vmem:[#allocation7 + $0x10] sm:$0xff]
        %v354 = vlaneseq
        %v355 = vshrl.u32 %v354, 7
        %v356 = vsub.s32 0, %v355
        %v357 = vrot.slane %v351, %v356
        %v358 = vmul.f32 %v263, %v357
        %v359 = vmul.f32 %v264, %v357
        %v360 = vmul.f32 %v265, %v357
        %v361 = vmul.f32 %v266, %v357
        %v362 = vmul.f32 %v267, %v357
        %v363 = vmul.f32 %v268, %v357
        %v364 = vmul.f32 %v269, %v357
        %v365 = vmul.f32 %v270, %v357
        %v366 = vmul.f32 %v271, %v357
        %v367 = vmul.f32 %v272, %v357
        %v368 = vmul.f32 %v273, %v357
        %v369 = vmul.f32 %v274, %v357
        %v370 = vmul.f32 %v275, %v357
        %v371 = vmul.f32 %v276, %v357
        %v372 = vmul.f32 %v277, %v357
        %v373 = vmul.f32 %v278, %v357
        %374 = vadd.xlane.f32.xlu0 %v358
        %v375 = vpop.xlane.xlu0 %374
        %376 = vadd.xlane.f32.xlu0 %v359
        %v377 = vpop.xlane.xlu0 %376
        %378 = vadd.xlane.f32.xlu0 %v360
        %v379 = vpop.xlane.xlu0 %378
        %380 = vadd.xlane.f32.xlu0 %v361
        %v381 = vpop.xlane.xlu0 %380
        %382 = vadd.xlane.f32.xlu0 %v362
        %v383 = vpop.xlane.xlu0 %382
        %384 = vadd.xlane.f32.xlu0 %v363
        %v385 = vpop.xlane.xlu0 %384
        %386 = vadd.xlane.f32.xlu0 %v364
        %v387 = vpop.xlane.xlu0 %386
        %388 = vadd.xlane.f32.xlu0 %v365
        %v389 = vpop.xlane.xlu0 %388
        %390 = vadd.xlane.f32.xlu0 %v366
        %v391 = vpop.xlane.xlu0 %390
        %392 = vadd.xlane.f32.xlu0 %v367
        %v393 = vpop.xlane.xlu0 %392
        %394 = vadd.xlane.f32.xlu0 %v368
        %v395 = vpop.xlane.xlu0 %394
        %396 = vadd.xlane.f32.xlu0 %v369
        %v397 = vpop.xlane.xlu0 %396
        %398 = vadd.xlane.f32.xlu0 %v370
        %v399 = vpop.xlane.xlu0 %398
        %400 = vadd.xlane.f32.xlu0 %v371
        %v401 = vpop.xlane.xlu0 %400
        %402 = vadd.xlane.f32.xlu0 %v372
        %v403 = vpop.xlane.xlu0 %402
        %404 = vadd.xlane.f32.xlu0 %v373
        %v405 = vpop.xlane.xlu0 %404
        %v422 = vlaneseq
        %v423 = vand.u32 %v422, 127
        %v424 = vlaneseq
        %v425 = vshrl.u32 %v424, 7
        %v426 = vsub.s32 %v423, %v425
        %v427 = vrot.slane %v375, %v426
        %v428 = vadd.s32 %v423, 4294967288
        %v429 = vlaneseq
        %v430 = vshrl.u32 %v429, 7
        %v431 = vsub.s32 %v428, %v430
        %v432 = vrot.slane %v377, %v431
        %vm433 = vcmask 130112
        %v434 = vsel %vm433, %v432, %v427
        %v435 = vlaneseq
        %v436 = vshrl.u32 %v435, 7
        %v437 = vsub.s32 %v423, %v436
        %v438 = vrot.slane %v379, %v437
        %v439 = vlaneseq
        %v440 = vshrl.u32 %v439, 7
        %v441 = vsub.s32 %v428, %v440
        %v442 = vrot.slane %v381, %v441
        %v443 = vsel %vm433, %v442, %v438
        %v444 = vlaneseq
        %v445 = vshrl.u32 %v444, 7
        %v446 = vsub.s32 %v423, %v445
        %v447 = vrot.slane %v383, %v446
        %v448 = vlaneseq
        %v449 = vshrl.u32 %v448, 7
        %v450 = vsub.s32 %v428, %v449
        %v451 = vrot.slane %v385, %v450
        %v452 = vsel %vm433, %v451, %v447
        %v453 = vlaneseq
        %v454 = vshrl.u32 %v453, 7
        %v455 = vsub.s32 %v423, %v454
        %v456 = vrot.slane %v387, %v455
        %v457 = vlaneseq
        %v458 = vshrl.u32 %v457, 7
        %v459 = vsub.s32 %v428, %v458
        %v460 = vrot.slane %v389, %v459
        %v461 = vsel %vm433, %v460, %v456
        %v462 = vlaneseq
        %v463 = vshrl.u32 %v462, 7
        %v464 = vsub.s32 %v423, %v463
        %v465 = vrot.slane %v391, %v464
        %v466 = vlaneseq
        %v467 = vshrl.u32 %v466, 7
        %v468 = vsub.s32 %v428, %v467
        %v469 = vrot.slane %v393, %v468
        %v470 = vsel %vm433, %v469, %v465
        %v471 = vlaneseq
        %v472 = vshrl.u32 %v471, 7
        %v473 = vsub.s32 %v423, %v472
        %v474 = vrot.slane %v395, %v473
        %v475 = vlaneseq
        %v476 = vshrl.u32 %v475, 7
        %v477 = vsub.s32 %v428, %v476
        %v478 = vrot.slane %v397, %v477
        %v479 = vsel %vm433, %v478, %v474
        %v480 = vlaneseq
        %v481 = vshrl.u32 %v480, 7
        %v482 = vsub.s32 %v423, %v481
        %v483 = vrot.slane %v399, %v482
        %v484 = vlaneseq
        %v485 = vshrl.u32 %v484, 7
        %v486 = vsub.s32 %v428, %v485
        %v487 = vrot.slane %v401, %v486
        %v488 = vsel %vm433, %v487, %v483
        %v489 = vlaneseq
        %v490 = vshrl.u32 %v489, 7
        %v491 = vsub.s32 %v423, %v490
        %v492 = vrot.slane %v403, %v491
        %v493 = vlaneseq
        %v494 = vshrl.u32 %v493, 7
        %v495 = vsub.s32 %v428, %v494
        %v496 = vrot.slane %v405, %v495
        %v497 = vsel %vm433, %v496, %v492
        %vm498 = vcmask 1041409
        %v499 = vsel %vm498, %v443, %v434
        %vm500 = vcmask 1042434
        %v501 = vsel %vm500, %v452, %v499
        %vm502 = vcmask 1043459
        %v503 = vsel %vm502, %v461, %v501
        %vm504 = vcmask 1044484
        %v505 = vsel %vm504, %v470, %v503
        %vm506 = vcmask 1045509
        %v507 = vsel %vm506, %v479, %v505
        %vm508 = vcmask 1046534
        %v509 = vsel %vm508, %v488, %v507
        %vm510 = vcmask 1047559
        %v511 = vsel %vm510, %v497, %v509
        %vm513 = vcmask 130048
        %v514 = vsel %vm513, %v511, -inf
        %515 = vmax.xlane.f32.xlu0 %v514
        %v516 = vpop.xlane.xlu0 %515
        %v518 = vlaneseq
        %v519 = vshrl.u32 %v518, 7
        %v520 = vsub.s32 0, %v519
        %v521 = vrot.slane %v516, %v520
        %v522 = vlaneseq
        %v523 = vshrl.u32 %v522, 7
        %v524 = vsub.s32 1, %v523
        %v525 = vrot.slane %v516, %v524
        %v526 = vlaneseq
        %v527 = vshrl.u32 %v526, 7
        %v528 = vsub.s32 2, %v527
        %v529 = vrot.slane %v516, %v528
        %v530 = vlaneseq
        %v531 = vshrl.u32 %v530, 7
        %v532 = vsub.s32 3, %v531
        %v533 = vrot.slane %v516, %v532
        %v534 = vlaneseq
        %v535 = vshrl.u32 %v534, 7
        %v536 = vsub.s32 4, %v535
        %v537 = vrot.slane %v516, %v536
        %v538 = vlaneseq
        %v539 = vshrl.u32 %v538, 7
        %v540 = vsub.s32 5, %v539
        %v541 = vrot.slane %v516, %v540
        %v542 = vlaneseq
        %v543 = vshrl.u32 %v542, 7
        %v544 = vsub.s32 6, %v543
        %v545 = vrot.slane %v516, %v544
        %v546 = vlaneseq
        %v547 = vshrl.u32 %v546, 7
        %v548 = vsub.s32 7, %v547
        %v549 = vrot.slane %v516, %v548
        %vm558 = vcmp.eq.f32.partialorder %v375, %v521
        %vm559 = vcmp.eq.f32.partialorder %v377, %v521
        %vm560 = vcmp.eq.f32.partialorder %v379, %v525
        %vm561 = vcmp.eq.f32.partialorder %v381, %v525
        %vm562 = vcmp.eq.f32.partialorder %v383, %v529
        %vm563 = vcmp.eq.f32.partialorder %v385, %v529
        %vm564 = vcmp.eq.f32.partialorder %v387, %v533
        %vm565 = vcmp.eq.f32.partialorder %v389, %v533
        %vm566 = vcmp.eq.f32.partialorder %v391, %v537
        %vm567 = vcmp.eq.f32.partialorder %v393, %v537
        %vm568 = vcmp.eq.f32.partialorder %v395, %v541
        %vm569 = vcmp.eq.f32.partialorder %v397, %v541
        %vm570 = vcmp.eq.f32.partialorder %v399, %v545
        %vm571 = vcmp.eq.f32.partialorder %v401, %v545
        %vm572 = vcmp.eq.f32.partialorder %v403, %v549
        %vm573 = vcmp.eq.f32.partialorder %v405, %v549
        %575 = vbcast.lane.b32.xlu0 %v423, 256
        %v576 = vpop.permute.xlu0 %575
        %s578 = sor.u32 256, 8
        %579 = vbcast.lane.b32.xlu0 %v423, %s578
        %v580 = vpop.permute.xlu0 %579
        %v581 = vsel %vm558, %v576, 16
        %v582 = vsel %vm559, %v580, 16
        %v583 = vsel %vm560, %v576, 16
        %v584 = vsel %vm561, %v580, 16
        %v585 = vsel %vm562, %v576, 16
        %v586 = vsel %vm563, %v580, 16
        %v587 = vsel %vm564, %v576, 16
        %v588 = vsel %vm565, %v580, 16
        %v589 = vsel %vm566, %v576, 16
        %v590 = vsel %vm567, %v580, 16
        %v591 = vsel %vm568, %v576, 16
        %v592 = vsel %vm569, %v580, 16
        %v593 = vsel %vm570, %v576, 16
        %v594 = vsel %vm571, %v580, 16
        %v595 = vsel %vm572, %v576, 16
        %v596 = vsel %vm573, %v580, 16
        %597 = vset.pattern.permute.xlu0 0
        %598 = vperm.xlu0 %597, %v581
        %v599 = vpop.permute.xlu0 %598
        %600 = vset.pattern.permute.xlu0 0
        %601 = vperm.xlu0 %600, %v582
        %v602 = vpop.permute.xlu0 %601
        %603 = vset.pattern.permute.xlu0 0
        %604 = vperm.xlu0 %603, %v583
        %v605 = vpop.permute.xlu0 %604
        %606 = vset.pattern.permute.xlu0 0
        %607 = vperm.xlu0 %606, %v584
        %v608 = vpop.permute.xlu0 %607
        %609 = vset.pattern.permute.xlu0 0
        %610 = vperm.xlu0 %609, %v585
        %v611 = vpop.permute.xlu0 %610
        %612 = vset.pattern.permute.xlu0 0
        %613 = vperm.xlu0 %612, %v586
        %v614 = vpop.permute.xlu0 %613
        %615 = vset.pattern.permute.xlu0 0
        %616 = vperm.xlu0 %615, %v587
        %v617 = vpop.permute.xlu0 %616
        %618 = vset.pattern.permute.xlu0 0
        %619 = vperm.xlu0 %618, %v588
        %v620 = vpop.permute.xlu0 %619
        %621 = vset.pattern.permute.xlu0 0
        %622 = vperm.xlu0 %621, %v589
        %v623 = vpop.permute.xlu0 %622
        %624 = vset.pattern.permute.xlu0 0
        %625 = vperm.xlu0 %624, %v590
        %v626 = vpop.permute.xlu0 %625
        %627 = vset.pattern.permute.xlu0 0
        %628 = vperm.xlu0 %627, %v591
        %v629 = vpop.permute.xlu0 %628
        %630 = vset.pattern.permute.xlu0 0
        %631 = vperm.xlu0 %630, %v592
        %v632 = vpop.permute.xlu0 %631
        %633 = vset.pattern.permute.xlu0 0
        %634 = vperm.xlu0 %633, %v593
        %v635 = vpop.permute.xlu0 %634
        %636 = vset.pattern.permute.xlu0 0
        %637 = vperm.xlu0 %636, %v594
        %v638 = vpop.permute.xlu0 %637
        %639 = vset.pattern.permute.xlu0 0
        %640 = vperm.xlu0 %639, %v595
        %v641 = vpop.permute.xlu0 %640
        %642 = vset.pattern.permute.xlu0 0
        %643 = vperm.xlu0 %642, %v596
        %v644 = vpop.permute.xlu0 %643
        %v645 = vlaneseq
        %v646 = vshrl.u32 %v645, 7
        %v647 = vsub.s32 %v423, %v646
        %v648 = vrot.slane %v599, %v647
        %v649 = vlaneseq
        %v650 = vshrl.u32 %v649, 7
        %v651 = vsub.s32 %v428, %v650
        %v652 = vrot.slane %v602, %v651
        %v653 = vsel %vm433, %v652, %v648
        %v654 = vlaneseq
        %v655 = vshrl.u32 %v654, 7
        %v656 = vsub.s32 %v423, %v655
        %v657 = vrot.slane %v605, %v656
        %v658 = vlaneseq
        %v659 = vshrl.u32 %v658, 7
        %v660 = vsub.s32 %v428, %v659
        %v661 = vrot.slane %v608, %v660
        %v662 = vsel %vm433, %v661, %v657
        %v663 = vlaneseq
        %v664 = vshrl.u32 %v663, 7
        %v665 = vsub.s32 %v423, %v664
        %v666 = vrot.slane %v611, %v665
        %v667 = vlaneseq
        %v668 = vshrl.u32 %v667, 7
        %v669 = vsub.s32 %v428, %v668
        %v670 = vrot.slane %v614, %v669
        %v671 = vsel %vm433, %v670, %v666
        %v672 = vlaneseq
        %v673 = vshrl.u32 %v672, 7
        %v674 = vsub.s32 %v423, %v673
        %v675 = vrot.slane %v617, %v674
        %v676 = vlaneseq
        %v677 = vshrl.u32 %v676, 7
        %v678 = vsub.s32 %v428, %v677
        %v679 = vrot.slane %v620, %v678
        %v680 = vsel %vm433, %v679, %v675
        %v681 = vlaneseq
        %v682 = vshrl.u32 %v681, 7
        %v683 = vsub.s32 %v423, %v682
        %v684 = vrot.slane %v623, %v683
        %v685 = vlaneseq
        %v686 = vshrl.u32 %v685, 7
        %v687 = vsub.s32 %v428, %v686
        %v688 = vrot.slane %v626, %v687
        %v689 = vsel %vm433, %v688, %v684
        %v690 = vlaneseq
        %v691 = vshrl.u32 %v690, 7
        %v692 = vsub.s32 %v423, %v691
        %v693 = vrot.slane %v629, %v692
        %v694 = vlaneseq
        %v695 = vshrl.u32 %v694, 7
        %v696 = vsub.s32 %v428, %v695
        %v697 = vrot.slane %v632, %v696
        %v698 = vsel %vm433, %v697, %v693
        %v699 = vlaneseq
        %v700 = vshrl.u32 %v699, 7
        %v701 = vsub.s32 %v423, %v700
        %v702 = vrot.slane %v635, %v701
        %v703 = vlaneseq
        %v704 = vshrl.u32 %v703, 7
        %v705 = vsub.s32 %v428, %v704
        %v706 = vrot.slane %v638, %v705
        %v707 = vsel %vm433, %v706, %v702
        %v708 = vlaneseq
        %v709 = vshrl.u32 %v708, 7
        %v710 = vsub.s32 %v423, %v709
        %v711 = vrot.slane %v641, %v710
        %v712 = vlaneseq
        %v713 = vshrl.u32 %v712, 7
        %v714 = vsub.s32 %v428, %v713
        %v715 = vrot.slane %v644, %v714
        %v716 = vsel %vm433, %v715, %v711
        %v717 = vsel %vm498, %v662, %v653
        %v718 = vsel %vm500, %v671, %v717
        %v719 = vsel %vm502, %v680, %v718
        %v720 = vsel %vm504, %v689, %v719
        %v721 = vsel %vm506, %v698, %v720
        %v722 = vsel %vm508, %v707, %v721
        %v723 = vsel %vm510, %v716, %v722
        %v724 = vsel %vm513, %v723, 2147483647
        %v725 = vand.u32 %v724, 65535
        %v726 = vshra.s32 %v724, 16
        %v727 = vcvt.s32.f32 %v725
        %v728 = vcvt.s32.f32 %v726
        %729 = vmin.xlane.f32.xlu0 %v728
        %v730 = vpop.xlane.xlu0 %729
        %vm731 = vcmp.eq.f32.partialorder %v728, %v730
        %v732 = vsel %vm731, %v727, inf
        %733 = vmin.xlane.f32.xlu0 %v732
        %v734 = vpop.xlane.xlu0 %733
        %v735 = vcvt.f32.s32 %v734
        %v736 = vcvt.f32.s32 %v730
        %v737 = vshll.u32 %v736, 16
        %v738 = vadd.s32 %v737, %v735
        %vm739 = vcmp.eq.s32.totalorder %v423, %v738
        %v740 = vsel %vm739, 1, 0
        %v741 = vcvt.s32.f32 %v740
        %742 = vadd.xlane.f32.xlu0 %v263
        %v743 = vpop.xlane.xlu0 %742
        %744 = vadd.xlane.f32.xlu0 %v264
        %v745 = vpop.xlane.xlu0 %744
        %746 = vadd.xlane.f32.xlu0 %v265
        %v747 = vpop.xlane.xlu0 %746
        %748 = vadd.xlane.f32.xlu0 %v266
        %v749 = vpop.xlane.xlu0 %748
        %750 = vadd.xlane.f32.xlu0 %v267
        %v751 = vpop.xlane.xlu0 %750
        %752 = vadd.xlane.f32.xlu0 %v268
        %v753 = vpop.xlane.xlu0 %752
        %754 = vadd.xlane.f32.xlu0 %v269
        %v755 = vpop.xlane.xlu0 %754
        %756 = vadd.xlane.f32.xlu0 %v270
        %v757 = vpop.xlane.xlu0 %756
        %758 = vadd.xlane.f32.xlu0 %v271
        %v759 = vpop.xlane.xlu0 %758
        %760 = vadd.xlane.f32.xlu0 %v272
        %v761 = vpop.xlane.xlu0 %760
        %762 = vadd.xlane.f32.xlu0 %v273
        %v763 = vpop.xlane.xlu0 %762
        %764 = vadd.xlane.f32.xlu0 %v274
        %v765 = vpop.xlane.xlu0 %764
        %766 = vadd.xlane.f32.xlu0 %v275
        %v767 = vpop.xlane.xlu0 %766
        %768 = vadd.xlane.f32.xlu0 %v276
        %v769 = vpop.xlane.xlu0 %768
        %770 = vadd.xlane.f32.xlu0 %v277
        %v771 = vpop.xlane.xlu0 %770
        %772 = vadd.xlane.f32.xlu0 %v278
        %v773 = vpop.xlane.xlu0 %772
        %v774 = vrcp.pop 128.0
        %v775 = vmul.f32 %v743, %v774
        %v776 = vmul.f32 %v745, %v774
        %v777 = vmul.f32 %v747, %v774
        %v778 = vmul.f32 %v749, %v774
        %v779 = vmul.f32 %v751, %v774
        %v780 = vmul.f32 %v753, %v774
        %v781 = vmul.f32 %v755, %v774
        %v782 = vmul.f32 %v757, %v774
        %v783 = vmul.f32 %v759, %v774
        %v784 = vmul.f32 %v761, %v774
        %v785 = vmul.f32 %v763, %v774
        %v786 = vmul.f32 %v765, %v774
        %v787 = vmul.f32 %v767, %v774
        %v788 = vmul.f32 %v769, %v774
        %v789 = vmul.f32 %v771, %v774
        %v790 = vmul.f32 %v773, %v774
        %v791 = vsub.f32 %v263, %v775
        %v792 = vsub.f32 %v264, %v776
        %v793 = vsub.f32 %v265, %v777
        %v794 = vsub.f32 %v266, %v778
        %v795 = vsub.f32 %v267, %v779
        %v796 = vsub.f32 %v268, %v780
        %v797 = vsub.f32 %v269, %v781
        %v798 = vsub.f32 %v270, %v782
        %v799 = vsub.f32 %v271, %v783
        %v800 = vsub.f32 %v272, %v784
        %v801 = vsub.f32 %v273, %v785
        %v802 = vsub.f32 %v274, %v786
        %v803 = vsub.f32 %v275, %v787
        %v804 = vsub.f32 %v276, %v788
        %v805 = vsub.f32 %v277, %v789
        %v806 = vsub.f32 %v278, %v790
        %v807 = vmul.f32 %v791, %v791
        %v808 = vmul.f32 %v792, %v792
        %v809 = vmul.f32 %v793, %v793
        %v810 = vmul.f32 %v794, %v794
        %v811 = vmul.f32 %v795, %v795
        %v812 = vmul.f32 %v796, %v796
        %v813 = vmul.f32 %v797, %v797
        %v814 = vmul.f32 %v798, %v798
        %v815 = vmul.f32 %v799, %v799
        %v816 = vmul.f32 %v800, %v800
        %v817 = vmul.f32 %v801, %v801
        %v818 = vmul.f32 %v802, %v802
        %v819 = vmul.f32 %v803, %v803
        %v820 = vmul.f32 %v804, %v804
        %v821 = vmul.f32 %v805, %v805
        %v822 = vmul.f32 %v806, %v806
        %823 = vadd.xlane.f32.xlu0 %v807
        %v824 = vpop.xlane.xlu0 %823
        %825 = vadd.xlane.f32.xlu0 %v808
        %v826 = vpop.xlane.xlu0 %825
        %827 = vadd.xlane.f32.xlu0 %v809
        %v828 = vpop.xlane.xlu0 %827
        %829 = vadd.xlane.f32.xlu0 %v810
        %v830 = vpop.xlane.xlu0 %829
        %831 = vadd.xlane.f32.xlu0 %v811
        %v832 = vpop.xlane.xlu0 %831
        %833 = vadd.xlane.f32.xlu0 %v812
        %v834 = vpop.xlane.xlu0 %833
        %835 = vadd.xlane.f32.xlu0 %v813
        %v836 = vpop.xlane.xlu0 %835
        %837 = vadd.xlane.f32.xlu0 %v814
        %v838 = vpop.xlane.xlu0 %837
        %839 = vadd.xlane.f32.xlu0 %v815
        %v840 = vpop.xlane.xlu0 %839
        %841 = vadd.xlane.f32.xlu0 %v816
        %v842 = vpop.xlane.xlu0 %841
        %843 = vadd.xlane.f32.xlu0 %v817
        %v844 = vpop.xlane.xlu0 %843
        %845 = vadd.xlane.f32.xlu0 %v818
        %v846 = vpop.xlane.xlu0 %845
        %847 = vadd.xlane.f32.xlu0 %v819
        %v848 = vpop.xlane.xlu0 %847
        %849 = vadd.xlane.f32.xlu0 %v820
        %v850 = vpop.xlane.xlu0 %849
        %851 = vadd.xlane.f32.xlu0 %v821
        %v852 = vpop.xlane.xlu0 %851
        %853 = vadd.xlane.f32.xlu0 %v822
        %v854 = vpop.xlane.xlu0 %853
        %v855 = vmul.f32 %v824, %v774
        %v856 = vmul.f32 %v826, %v774
        %v857 = vmul.f32 %v828, %v774
        %v858 = vmul.f32 %v830, %v774
        %v859 = vmul.f32 %v832, %v774
        %v860 = vmul.f32 %v834, %v774
        %v861 = vmul.f32 %v836, %v774
        %v862 = vmul.f32 %v838, %v774
        %v863 = vmul.f32 %v840, %v774
        %v864 = vmul.f32 %v842, %v774
        %v865 = vmul.f32 %v844, %v774
        %v866 = vmul.f32 %v846, %v774
        %v867 = vmul.f32 %v848, %v774
        %v868 = vmul.f32 %v850, %v774
        %v869 = vmul.f32 %v852, %v774
        %v870 = vmul.f32 %v854, %v774
        %v871 = vadd.f32 %v855, 1e-05
        %v872 = vadd.f32 %v856, 1e-05
        %v873 = vadd.f32 %v857, 1e-05
        %v874 = vadd.f32 %v858, 1e-05
        %v875 = vadd.f32 %v859, 1e-05
        %v876 = vadd.f32 %v860, 1e-05
        %v877 = vadd.f32 %v861, 1e-05
        %v878 = vadd.f32 %v862, 1e-05
        %v879 = vadd.f32 %v863, 1e-05
        %v880 = vadd.f32 %v864, 1e-05
        %v881 = vadd.f32 %v865, 1e-05
        %v882 = vadd.f32 %v866, 1e-05
        %v883 = vadd.f32 %v867, 1e-05
        %v884 = vadd.f32 %v868, 1e-05
        %v885 = vadd.f32 %v869, 1e-05
        %v886 = vadd.f32 %v870, 1e-05
        %v887 = vrsqrt.pop %v871
        %v888 = vrsqrt.pop %v872
        %v889 = vrsqrt.pop %v873
        %v890 = vrsqrt.pop %v874
        %v891 = vrsqrt.pop %v875
        %v892 = vrsqrt.pop %v876
        %v893 = vrsqrt.pop %v877
        %v894 = vrsqrt.pop %v878
        %v895 = vrsqrt.pop %v879
        %v896 = vrsqrt.pop %v880
        %v897 = vrsqrt.pop %v881
        %v898 = vrsqrt.pop %v882
        %v899 = vrsqrt.pop %v883
        %v900 = vrsqrt.pop %v884
        %v901 = vrsqrt.pop %v885
        %v902 = vrsqrt.pop %v886
        %v903 = vmul.f32 %v791, %v887
        %v904 = vmul.f32 %v792, %v888
        %v905 = vmul.f32 %v793, %v889
        %v906 = vmul.f32 %v794, %v890
        %v907 = vmul.f32 %v795, %v891
        %v908 = vmul.f32 %v796, %v892
        %v909 = vmul.f32 %v797, %v893
        %v910 = vmul.f32 %v798, %v894
        %v911 = vmul.f32 %v799, %v895
        %v912 = vmul.f32 %v800, %v896
        %v913 = vmul.f32 %v801, %v897
        %v914 = vmul.f32 %v802, %v898
        %v915 = vmul.f32 %v803, %v899
        %v916 = vmul.f32 %v804, %v900
        %v917 = vmul.f32 %v805, %v901
        %v918 = vmul.f32 %v806, %v902
        %v919 = vlaneseq
        %v920 = vshrl.u32 %v919, 7
        %v921 = vsub.s32 1, %v920
        %v922 = vrot.slane %v351, %v921
        %v923 = vmul.f32 %v903, %v922
        %v924 = vmul.f32 %v904, %v922
        %v925 = vmul.f32 %v905, %v922
        %v926 = vmul.f32 %v906, %v922
        %v927 = vmul.f32 %v907, %v922
        %v928 = vmul.f32 %v908, %v922
        %v929 = vmul.f32 %v909, %v922
        %v930 = vmul.f32 %v910, %v922
        %v931 = vmul.f32 %v911, %v922
        %v932 = vmul.f32 %v912, %v922
        %v933 = vmul.f32 %v913, %v922
        %v934 = vmul.f32 %v914, %v922
        %v935 = vmul.f32 %v915, %v922
        %v936 = vmul.f32 %v916, %v922
        %v937 = vmul.f32 %v917, %v922
        %v938 = vmul.f32 %v918, %v922
        %v939 = vlaneseq
        %v940 = vshrl.u32 %v939, 7
        %v941 = vsub.s32 2, %v940
        %v942 = vrot.slane %v351, %v941
        %v943 = vadd.f32 %v923, %v942
        %v944 = vadd.f32 %v924, %v942
        %v945 = vadd.f32 %v925, %v942
        %v946 = vadd.f32 %v926, %v942
        %v947 = vadd.f32 %v927, %v942
        %v948 = vadd.f32 %v928, %v942
        %v949 = vadd.f32 %v929, %v942
        %v950 = vadd.f32 %v930, %v942
        %v951 = vadd.f32 %v931, %v942
        %v952 = vadd.f32 %v932, %v942
        %v953 = vadd.f32 %v933, %v942
        %v954 = vadd.f32 %v934, %v942
        %v955 = vadd.f32 %v935, %v942
        %v956 = vadd.f32 %v936, %v942
        %v957 = vadd.f32 %v937, %v942
        %v958 = vadd.f32 %v938, %v942
        %v959 = vpack.c.bf16 %v944, %v943
        %v960 = vpack.c.bf16 %v946, %v945
        %v961 = vpack.c.bf16 %v948, %v947
        %v962 = vpack.c.bf16 %v950, %v949
        %v963 = vpack.c.bf16 %v952, %v951
        %v964 = vpack.c.bf16 %v954, %v953
        %v965 = vpack.c.bf16 %v956, %v955
        %v966 = vpack.c.bf16 %v958, %v957
        %v967 = vlaneseq
        %v968 = vshrl.u32 %v967, 7
        %v969 = vsub.s32 0, %v968
        %v970 = vrot.slane %v296, %v969
        %v971 = vlaneseq
        %v972 = vshrl.u32 %v971, 7
        %v973 = vsub.s32 0, %v972
        %v974 = vrot.slane %v297, %v973
        %v991 = vunpack.c.l.b16 %v279
        %v992 = vunpack.c.h.b16 %v279
        %v993 = vunpack.c.l.b16 %v280
        %v994 = vunpack.c.h.b16 %v280
        %v995 = vunpack.c.l.b16 %v281
        %v996 = vunpack.c.h.b16 %v281
        %v997 = vunpack.c.l.b16 %v282
        %v998 = vunpack.c.h.b16 %v282
        %v999 = vunpack.c.l.b16 %v283
        %v1000 = vunpack.c.h.b16 %v283
        %v1001 = vunpack.c.l.b16 %v284
        %v1002 = vunpack.c.h.b16 %v284
        %v1003 = vunpack.c.l.b16 %v285
        %v1004 = vunpack.c.h.b16 %v285
        %v1005 = vunpack.c.l.b16 %v286
        %v1006 = vunpack.c.h.b16 %v286
        %v1007 = vunpack.c.l.b16 %v287
        %v1008 = vunpack.c.h.b16 %v287
        %v1009 = vunpack.c.l.b16 %v288
        %v1010 = vunpack.c.h.b16 %v288
        %v1011 = vunpack.c.l.b16 %v289
        %v1012 = vunpack.c.h.b16 %v289
        %v1013 = vunpack.c.l.b16 %v290
        %v1014 = vunpack.c.h.b16 %v290
        %v1015 = vunpack.c.l.b16 %v291
        %v1016 = vunpack.c.h.b16 %v291
        %v1017 = vunpack.c.l.b16 %v292
        %v1018 = vunpack.c.h.b16 %v292
        %v1019 = vunpack.c.l.b16 %v293
        %v1020 = vunpack.c.h.b16 %v293
        %v1021 = vunpack.c.l.b16 %v294
        %v1022 = vunpack.c.h.b16 %v294
        %v1023 = vpack.c.b16 %v993, %v991
        %v1024 = vpack.c.b16 %v994, %v992
        %v1025 = vpack.c.b16 %v997, %v995
        %v1026 = vpack.c.b16 %v998, %v996
        %v1027 = vpack.c.b16 %v1001, %v999
        %v1028 = vpack.c.b16 %v1002, %v1000
        %v1029 = vpack.c.b16 %v1005, %v1003
        %v1030 = vpack.c.b16 %v1006, %v1004
        %v1031 = vpack.c.b16 %v1009, %v1007
        %v1032 = vpack.c.b16 %v1010, %v1008
        %v1033 = vpack.c.b16 %v1013, %v1011
        %v1034 = vpack.c.b16 %v1014, %v1012
        %v1035 = vpack.c.b16 %v1017, %v1015
        %v1036 = vpack.c.b16 %v1018, %v1016
        %v1037 = vpack.c.b16 %v1021, %v1019
        %v1038 = vpack.c.b16 %v1022, %v1020
        %1055 = vmatprep.subr.bf16.mxu0 %v1038
        %1056 = vmatpush1.bf16.msra.mxu0 %v1037
        %1057 = vmatprep.subr.bf16.mxu0 %v1036
        %1058 = vmatpush1.bf16.msra.mxu0 %v1035
        %1059 = vmatprep.subr.bf16.mxu0 %v1034
        %1060 = vmatpush1.bf16.msra.mxu0 %v1033
        %1061 = vmatprep.subr.bf16.mxu0 %v1032
        %1062 = vmatpush1.bf16.msra.mxu0 %v1031
        %1063 = vmatprep.subr.bf16.mxu0 %v1030
        %1064 = vmatpush1.bf16.msra.mxu0 %v1029
        %1065 = vmatprep.subr.bf16.mxu0 %v1028
        %1066 = vmatpush1.bf16.msra.mxu0 %v1027
        %1067 = vmatprep.subr.bf16.mxu0 %v1026
        %1068 = vmatpush1.bf16.msra.mxu0 %v1025
        %1069 = vmatprep.subr.bf16.mxu0 %v1024
        %1070 = vmatpush1.bf16.msra.mxu0 %v1023
        %1071 = vmatprep.subr.bf16.mxu0 0
        %1072 = vmatpush2.bf16.msra.mxu0 0
        %1073 = vmatprep.subr.bf16.mxu0 0
        %1074 = vmatpush2.bf16.msra.mxu0 0
        %1075 = vmatprep.subr.bf16.mxu0 0
        %1076 = vmatpush2.bf16.msra.mxu0 0
        %1077 = vmatprep.subr.bf16.mxu0 0
        %1078 = vmatpush2.bf16.msra.mxu0 0
        %1079 = vmatprep.subr.bf16.mxu0 0
        %1080 = vmatpush2.bf16.msra.mxu0 0
        %1081 = vmatprep.subr.bf16.mxu0 0
        %1082 = vmatpush2.bf16.msra.mxu0 0
        %1083 = vmatprep.subr.bf16.mxu0 0
        %1084 = vmatpush2.bf16.msra.mxu0 0
        %1085 = vmatprep.subr.bf16.mxu0 0
        %1086 = vmatpush2.bf16.msra.mxu0 0
        %1087 = vmatprep.mubr.bf16.mxu0 0
        %1088 = vmatmul.mubr.bf16.gmra.mxu0 %v959
        %v1089 = vpop.f32.mrf.mxu0
        %v1090 = vadd.f32 %v970, %v1089
        %v1091 = vpop.f32.mrf.mxu0
        %v1092 = vadd.f32 %v974, %v1091
        %v1093 = vpop.f32.mrf.mxu0
        %v1094 = vadd.f32 %v970, %v1093
        %v1095 = vpop.f32.mrf.mxu0
        %v1096 = vadd.f32 %v974, %v1095
        %1097 = vmatprep.mubr.bf16.mxu0 0
        %1098 = vmatmul.mubr.bf16.gmra.mxu0 %v960
        %v1099 = vpop.f32.mrf.mxu0
        %v1100 = vadd.f32 %v970, %v1099
        %v1101 = vpop.f32.mrf.mxu0
        %v1102 = vadd.f32 %v974, %v1101
        %v1103 = vpop.f32.mrf.mxu0
        %v1104 = vadd.f32 %v970, %v1103
        %v1105 = vpop.f32.mrf.mxu0
        %v1106 = vadd.f32 %v974, %v1105
        %1107 = vmatprep.mubr.bf16.mxu0 0
        %1108 = vmatmul.mubr.bf16.gmra.mxu0 %v961
        %v1109 = vpop.f32.mrf.mxu0
        %v1110 = vadd.f32 %v970, %v1109
        %v1111 = vpop.f32.mrf.mxu0
        %v1112 = vadd.f32 %v974, %v1111
        %v1113 = vpop.f32.mrf.mxu0
        %v1114 = vadd.f32 %v970, %v1113
        %v1115 = vpop.f32.mrf.mxu0
        %v1116 = vadd.f32 %v974, %v1115
        %1117 = vmatprep.mubr.bf16.mxu0 0
        %1118 = vmatmul.mubr.bf16.gmra.mxu0 %v962
        %v1119 = vpop.f32.mrf.mxu0
        %v1120 = vadd.f32 %v970, %v1119
        %v1121 = vpop.f32.mrf.mxu0
        %v1122 = vadd.f32 %v974, %v1121
        %v1123 = vpop.f32.mrf.mxu0
        %v1124 = vadd.f32 %v970, %v1123
        %v1125 = vpop.f32.mrf.mxu0
        %v1126 = vadd.f32 %v974, %v1125
        %1127 = vmatprep.mubr.bf16.mxu0 0
        %1128 = vmatmul.mubr.bf16.gmra.mxu0 %v963
        %v1129 = vpop.f32.mrf.mxu0
        %v1130 = vadd.f32 %v970, %v1129
        %v1131 = vpop.f32.mrf.mxu0
        %v1132 = vadd.f32 %v974, %v1131
        %v1133 = vpop.f32.mrf.mxu0
        %v1134 = vadd.f32 %v970, %v1133
        %v1135 = vpop.f32.mrf.mxu0
        %v1136 = vadd.f32 %v974, %v1135
        %1137 = vmatprep.mubr.bf16.mxu0 0
        %1138 = vmatmul.mubr.bf16.gmra.mxu0 %v964
        %v1139 = vpop.f32.mrf.mxu0
        %v1140 = vadd.f32 %v970, %v1139
        %v1141 = vpop.f32.mrf.mxu0
        %v1142 = vadd.f32 %v974, %v1141
        %v1143 = vpop.f32.mrf.mxu0
        %v1144 = vadd.f32 %v970, %v1143
        %v1145 = vpop.f32.mrf.mxu0
        %v1146 = vadd.f32 %v974, %v1145
        %1147 = vmatprep.mubr.bf16.mxu0 0
        %1148 = vmatmul.mubr.bf16.gmra.mxu0 %v965
        %v1149 = vpop.f32.mrf.mxu0
        %v1150 = vadd.f32 %v970, %v1149
        %v1151 = vpop.f32.mrf.mxu0
        %v1152 = vadd.f32 %v974, %v1151
        %v1153 = vpop.f32.mrf.mxu0
        %v1154 = vadd.f32 %v970, %v1153
        %v1155 = vpop.f32.mrf.mxu0
        %v1156 = vadd.f32 %v974, %v1155
        %1157 = vmatprep.mubr.bf16.mxu0 0
        %1158 = vmatmul.mubr.bf16.gmra.mxu0 %v966
        %v1159 = vpop.f32.mrf.mxu0
        %v1160 = vadd.f32 %v970, %v1159
        %v1161 = vpop.f32.mrf.mxu0
        %v1162 = vadd.f32 %v974, %v1161
        %v1163 = vpop.f32.mrf.mxu0
        %v1164 = vadd.f32 %v970, %v1163
        %v1165 = vpop.f32.mrf.mxu0
        %v1166 = vadd.f32 %v974, %v1165
        %1167 = vdwg.mxu0
        %v1168 = vlaneseq
        %v1169 = vshrl.u32 %v1168, 7
        %v1170 = vsub.s32 0, %v1169
        %v1171 = vrot.slane %v741, %v1170
        %1173 = vbcast.lane.b32.xlu0 %v1171, 256
        %v1174 = vpop.permute.xlu0 %1173
        %s1176 = sor.u32 256, 8
        %1177 = vbcast.lane.b32.xlu0 %v1171, %s1176
        %v1178 = vpop.permute.xlu0 %1177
        %v1179 = vlaneseq
        %v1180 = vshrl.u32 %v1179, 7
        %v1181 = vsub.s32 1, %v1180
        %v1182 = vrot.slane %v741, %v1181
        %1184 = vbcast.lane.b32.xlu0 %v1182, 256
        %v1185 = vpop.permute.xlu0 %1184
        %s1187 = sor.u32 256, 8
        %1188 = vbcast.lane.b32.xlu0 %v1182, %s1187
        %v1189 = vpop.permute.xlu0 %1188
        %v1190 = vlaneseq
        %v1191 = vshrl.u32 %v1190, 7
        %v1192 = vsub.s32 2, %v1191
        %v1193 = vrot.slane %v741, %v1192
        %1195 = vbcast.lane.b32.xlu0 %v1193, 256
        %v1196 = vpop.permute.xlu0 %1195
        %s1198 = sor.u32 256, 8
        %1199 = vbcast.lane.b32.xlu0 %v1193, %s1198
        %v1200 = vpop.permute.xlu0 %1199
        %v1201 = vlaneseq
        %v1202 = vshrl.u32 %v1201, 7
        %v1203 = vsub.s32 3, %v1202
        %v1204 = vrot.slane %v741, %v1203
        %1206 = vbcast.lane.b32.xlu0 %v1204, 256
        %v1207 = vpop.permute.xlu0 %1206
        %s1209 = sor.u32 256, 8
        %1210 = vbcast.lane.b32.xlu0 %v1204, %s1209
        %v1211 = vpop.permute.xlu0 %1210
        %v1212 = vlaneseq
        %v1213 = vshrl.u32 %v1212, 7
        %v1214 = vsub.s32 4, %v1213
        %v1215 = vrot.slane %v741, %v1214
        %1217 = vbcast.lane.b32.xlu0 %v1215, 256
        %v1218 = vpop.permute.xlu0 %1217
        %s1220 = sor.u32 256, 8
        %1221 = vbcast.lane.b32.xlu0 %v1215, %s1220
        %v1222 = vpop.permute.xlu0 %1221
        %v1223 = vlaneseq
        %v1224 = vshrl.u32 %v1223, 7
        %v1225 = vsub.s32 5, %v1224
        %v1226 = vrot.slane %v741, %v1225
        %1228 = vbcast.lane.b32.xlu0 %v1226, 256
        %v1229 = vpop.permute.xlu0 %1228
        %s1231 = sor.u32 256, 8
        %1232 = vbcast.lane.b32.xlu0 %v1226, %s1231
        %v1233 = vpop.permute.xlu0 %1232
        %v1234 = vlaneseq
        %v1235 = vshrl.u32 %v1234, 7
        %v1236 = vsub.s32 6, %v1235
        %v1237 = vrot.slane %v741, %v1236
        %1239 = vbcast.lane.b32.xlu0 %v1237, 256
        %v1240 = vpop.permute.xlu0 %1239
        %s1242 = sor.u32 256, 8
        %1243 = vbcast.lane.b32.xlu0 %v1237, %s1242
        %v1244 = vpop.permute.xlu0 %1243
        %v1245 = vlaneseq
        %v1246 = vshrl.u32 %v1245, 7
        %v1247 = vsub.s32 7, %v1246
        %v1248 = vrot.slane %v741, %v1247
        %1250 = vbcast.lane.b32.xlu0 %v1248, 256
        %v1251 = vpop.permute.xlu0 %1250
        %s1253 = sor.u32 256, 8
        %1254 = vbcast.lane.b32.xlu0 %v1248, %s1253
        %v1255 = vpop.permute.xlu0 %1254
        %v1256 = vmul.f32 %v1174, %v263
        %v1257 = vmul.f32 %v1178, %v264
        %v1258 = vmul.f32 %v1185, %v265
        %v1259 = vmul.f32 %v1189, %v266
        %v1260 = vmul.f32 %v1196, %v267
        %v1261 = vmul.f32 %v1200, %v268
        %v1262 = vmul.f32 %v1207, %v269
        %v1263 = vmul.f32 %v1211, %v270
        %v1264 = vmul.f32 %v1218, %v271
        %v1265 = vmul.f32 %v1222, %v272
        %v1266 = vmul.f32 %v1229, %v273
        %v1267 = vmul.f32 %v1233, %v274
        %v1268 = vmul.f32 %v1240, %v275
        %v1269 = vmul.f32 %v1244, %v276
        %v1270 = vmul.f32 %v1251, %v277
        %v1271 = vmul.f32 %v1255, %v278
        %v1272 = vadd.f32 %v1256, %v1257
        %v1273 = vrot.slane %v1272, 4
        %v1274 = vadd.f32 %v1272, %v1273
        %v1275 = vrot.slane %v1274, 2
        %v1276 = vadd.f32 %v1274, %v1275
        %v1277 = vrot.slane %v1276, 1
        %v1278 = vadd.f32 %v1276, %v1277
        %v1279 = vadd.f32 %v1258, %v1259
        %v1280 = vrot.slane %v1279, 4
        %v1281 = vadd.f32 %v1279, %v1280
        %v1282 = vrot.slane %v1281, 2
        %v1283 = vadd.f32 %v1281, %v1282
        %v1284 = vrot.slane %v1283, 1
        %v1285 = vadd.f32 %v1283, %v1284
        %v1286 = vadd.f32 %v1260, %v1261
        %v1287 = vrot.slane %v1286, 4
        %v1288 = vadd.f32 %v1286, %v1287
        %v1289 = vrot.slane %v1288, 2
        %v1290 = vadd.f32 %v1288, %v1289
        %v1291 = vrot.slane %v1290, 1
        %v1292 = vadd.f32 %v1290, %v1291
        %v1293 = vadd.f32 %v1262, %v1263
        %v1294 = vrot.slane %v1293, 4
        %v1295 = vadd.f32 %v1293, %v1294
        %v1296 = vrot.slane %v1295, 2
        %v1297 = vadd.f32 %v1295, %v1296
        %v1298 = vrot.slane %v1297, 1
        %v1299 = vadd.f32 %v1297, %v1298
        %v1300 = vadd.f32 %v1264, %v1265
        %v1301 = vrot.slane %v1300, 4
        %v1302 = vadd.f32 %v1300, %v1301
        %v1303 = vrot.slane %v1302, 2
        %v1304 = vadd.f32 %v1302, %v1303
        %v1305 = vrot.slane %v1304, 1
        %v1306 = vadd.f32 %v1304, %v1305
        %v1307 = vadd.f32 %v1266, %v1267
        %v1308 = vrot.slane %v1307, 4
        %v1309 = vadd.f32 %v1307, %v1308
        %v1310 = vrot.slane %v1309, 2
        %v1311 = vadd.f32 %v1309, %v1310
        %v1312 = vrot.slane %v1311, 1
        %v1313 = vadd.f32 %v1311, %v1312
        %v1314 = vadd.f32 %v1268, %v1269
        %v1315 = vrot.slane %v1314, 4
        %v1316 = vadd.f32 %v1314, %v1315
        %v1317 = vrot.slane %v1316, 2
        %v1318 = vadd.f32 %v1316, %v1317
        %v1319 = vrot.slane %v1318, 1
        %v1320 = vadd.f32 %v1318, %v1319
        %v1321 = vadd.f32 %v1270, %v1271
        %v1322 = vrot.slane %v1321, 4
        %v1323 = vadd.f32 %v1321, %v1322
        %v1324 = vrot.slane %v1323, 2
        %v1325 = vadd.f32 %v1323, %v1324
        %v1326 = vrot.slane %v1325, 1
        %v1327 = vadd.f32 %v1325, %v1326
        %v1336 = vsel %vm498, %v1285, %v1278
        %v1337 = vsel %vm500, %v1292, %v1336
        %v1338 = vsel %vm502, %v1299, %v1337
        %v1339 = vsel %vm504, %v1306, %v1338
        %v1340 = vsel %vm506, %v1313, %v1339
        %v1341 = vsel %vm508, %v1320, %v1340
        %v1342 = vsel %vm510, %v1327, %v1341
        %1344 = vadd.xlane.f32.xlu0 %v1342
        %v1345 = vpop.xlane.xlu0 %1344
        %v1346 = vmul.f32 %v1345, %v774
        %v1348 = vrot.slane %v1346, 1
        %v1349 = vrot.slane %v1346, 2
        %v1350 = vrot.slane %v1346, 3
        %v1351 = vrot.slane %v1346, 4
        %v1352 = vrot.slane %v1346, 5
        %v1353 = vrot.slane %v1346, 6
        %v1354 = vrot.slane %v1346, 7
        %v1363 = vsub.f32 %v1278, %v1346
        %v1364 = vsub.f32 %v1285, %v1348
        %v1365 = vsub.f32 %v1292, %v1349
        %v1366 = vsub.f32 %v1299, %v1350
        %v1367 = vsub.f32 %v1306, %v1351
        %v1368 = vsub.f32 %v1313, %v1352
        %v1369 = vsub.f32 %v1320, %v1353
        %v1370 = vsub.f32 %v1327, %v1354
        %v1371 = vmul.f32 %v1363, %v1363
        %v1372 = vmul.f32 %v1364, %v1364
        %v1373 = vmul.f32 %v1365, %v1365
        %v1374 = vmul.f32 %v1366, %v1366
        %v1375 = vmul.f32 %v1367, %v1367
        %v1376 = vmul.f32 %v1368, %v1368
        %v1377 = vmul.f32 %v1369, %v1369
        %v1378 = vmul.f32 %v1370, %v1370
        %v1387 = vrot.slane %v1372, 7
        %v1388 = vsel %vm498, %v1387, %v1371
        %v1389 = vrot.slane %v1373, 6
        %v1390 = vsel %vm500, %v1389, %v1388
        %v1391 = vrot.slane %v1374, 5
        %v1392 = vsel %vm502, %v1391, %v1390
        %v1393 = vrot.slane %v1375, 4
        %v1394 = vsel %vm504, %v1393, %v1392
        %v1395 = vrot.slane %v1376, 3
        %v1396 = vsel %vm506, %v1395, %v1394
        %v1397 = vrot.slane %v1377, 2
        %v1398 = vsel %vm508, %v1397, %v1396
        %v1399 = vrot.slane %v1378, 1
        %v1400 = vsel %vm510, %v1399, %v1398
        %1402 = vadd.xlane.f32.xlu0 %v1400
        %v1403 = vpop.xlane.xlu0 %1402
        %v1404 = vmul.f32 %v1403, %v774
        %v1405 = vadd.f32 %v1404, 1e-05
        %v1406 = vrsqrt.pop %v1405
        %v1408 = vrot.slane %v1406, 1
        %v1409 = vrot.slane %v1406, 2
        %v1410 = vrot.slane %v1406, 3
        %v1411 = vrot.slane %v1406, 4
        %v1412 = vrot.slane %v1406, 5
        %v1413 = vrot.slane %v1406, 6
        %v1414 = vrot.slane %v1406, 7
        %v1423 = vmul.f32 %v1363, %v1406
        %v1424 = vmul.f32 %v1364, %v1408
        %v1425 = vmul.f32 %v1365, %v1409
        %v1426 = vmul.f32 %v1366, %v1410
        %v1427 = vmul.f32 %v1367, %v1411
        %v1428 = vmul.f32 %v1368, %v1412
        %v1429 = vmul.f32 %v1369, %v1413
        %v1430 = vmul.f32 %v1370, %v1414
        %v1431 = vmul.f32 %v1423, %v922
        %v1432 = vmul.f32 %v1424, %v922
        %v1433 = vmul.f32 %v1425, %v922
        %v1434 = vmul.f32 %v1426, %v922
        %v1435 = vmul.f32 %v1427, %v922
        %v1436 = vmul.f32 %v1428, %v922
        %v1437 = vmul.f32 %v1429, %v922
        %v1438 = vmul.f32 %v1430, %v922
        %v1439 = vadd.f32 %v1431, %v942
        %v1440 = vadd.f32 %v1432, %v942
        %v1441 = vadd.f32 %v1433, %v942
        %v1442 = vadd.f32 %v1434, %v942
        %v1443 = vadd.f32 %v1435, %v942
        %v1444 = vadd.f32 %v1436, %v942
        %v1445 = vadd.f32 %v1437, %v942
        %v1446 = vadd.f32 %v1438, %v942
        %v1447 = vpack.c.bf16 %v1439, %v1439
        %v1448 = vpack.c.bf16 %v1440, %v1440
        %v1449 = vpack.c.bf16 %v1441, %v1441
        %v1450 = vpack.c.bf16 %v1442, %v1442
        %v1451 = vpack.c.bf16 %v1443, %v1443
        %v1452 = vpack.c.bf16 %v1444, %v1444
        %v1453 = vpack.c.bf16 %v1445, %v1445
        %v1454 = vpack.c.bf16 %v1446, %v1446
        %v1455 = vlaneseq
        %v1456 = vshrl.u32 %v1455, 7
        %v1457 = vsub.s32 0, %v1456
        %v1458 = vrot.slane %v315, %v1457
        %v1467 = vunpack.c.l.b16 %v1447
        %v1468 = vunpack.c.l.b16 %v1448
        %v1469 = vunpack.c.l.b16 %v1449
        %v1470 = vunpack.c.l.b16 %v1450
        %v1471 = vunpack.c.l.b16 %v1451
        %v1472 = vunpack.c.l.b16 %v1452
        %v1473 = vunpack.c.l.b16 %v1453
        %v1474 = vunpack.c.l.b16 %v1454
        %v1475 = vrot.slane %v1468, 7
        %v1476 = vsel %vm498, %v1475, %v1467
        %v1477 = vrot.slane %v1469, 6
        %v1478 = vsel %vm500, %v1477, %v1476
        %v1479 = vrot.slane %v1470, 5
        %v1480 = vsel %vm502, %v1479, %v1478
        %v1481 = vrot.slane %v1471, 4
        %v1482 = vsel %vm504, %v1481, %v1480
        %v1483 = vrot.slane %v1472, 3
        %v1484 = vsel %vm506, %v1483, %v1482
        %v1485 = vrot.slane %v1473, 2
        %v1486 = vsel %vm508, %v1485, %v1484
        %v1487 = vrot.slane %v1474, 1
        %v1488 = vsel %vm510, %v1487, %v1486
        %v1489 = vpack.c.b16 %v1488, %v1488
        %v1507 = vunpack.c.l.b16 %v298
        %v1508 = vunpack.c.l.b16 %v299
        %v1509 = vunpack.c.l.b16 %v300
        %v1510 = vunpack.c.l.b16 %v301
        %v1511 = vunpack.c.l.b16 %v302
        %v1512 = vunpack.c.l.b16 %v303
        %v1513 = vunpack.c.l.b16 %v304
        %v1514 = vunpack.c.l.b16 %v305
        %v1515 = vunpack.c.l.b16 %v306
        %v1516 = vunpack.c.l.b16 %v307
        %v1517 = vunpack.c.l.b16 %v308
        %v1518 = vunpack.c.l.b16 %v309
        %v1519 = vunpack.c.l.b16 %v310
        %v1520 = vunpack.c.l.b16 %v311
        %v1521 = vunpack.c.l.b16 %v312
        %v1522 = vunpack.c.l.b16 %v313
        %v1523 = vpack.c.b16 %v1508, %v1507
        %v1524 = vpack.c.b16 %v1510, %v1509
        %v1525 = vpack.c.b16 %v1512, %v1511
        %v1526 = vpack.c.b16 %v1514, %v1513
        %v1527 = vpack.c.b16 %v1516, %v1515
        %v1528 = vpack.c.b16 %v1518, %v1517
        %v1529 = vpack.c.b16 %v1520, %v1519
        %v1530 = vpack.c.b16 %v1522, %v1521
        %1539 = vmatprep.subr.bf16.mxu0 0
        %1540 = vmatpush1.bf16.msra.mxu0 %v1530
        %1541 = vmatprep.subr.bf16.mxu0 0
        %1542 = vmatpush1.bf16.msra.mxu0 %v1529
        %1543 = vmatprep.subr.bf16.mxu0 0
        %1544 = vmatpush1.bf16.msra.mxu0 %v1528
        %1545 = vmatprep.subr.bf16.mxu0 0
        %1546 = vmatpush1.bf16.msra.mxu0 %v1527
        %1547 = vmatprep.subr.bf16.mxu0 0
        %1548 = vmatpush1.bf16.msra.mxu0 %v1526
        %1549 = vmatprep.subr.bf16.mxu0 0
        %1550 = vmatpush1.bf16.msra.mxu0 %v1525
        %1551 = vmatprep.subr.bf16.mxu0 0
        %1552 = vmatpush1.bf16.msra.mxu0 %v1524
        %1553 = vmatprep.subr.bf16.mxu0 0
        %1554 = vmatpush1.bf16.msra.mxu0 %v1523
        %1555 = vmatprep.subr.bf16.mxu0 0
        %1556 = vmatpush2.bf16.msra.mxu0 0
        %1557 = vmatprep.subr.bf16.mxu0 0
        %1558 = vmatpush2.bf16.msra.mxu0 0
        %1559 = vmatprep.subr.bf16.mxu0 0
        %1560 = vmatpush2.bf16.msra.mxu0 0
        %1561 = vmatprep.subr.bf16.mxu0 0
        %1562 = vmatpush2.bf16.msra.mxu0 0
        %1563 = vmatprep.subr.bf16.mxu0 0
        %1564 = vmatpush2.bf16.msra.mxu0 0
        %1565 = vmatprep.subr.bf16.mxu0 0
        %1566 = vmatpush2.bf16.msra.mxu0 0
        %1567 = vmatprep.subr.bf16.mxu0 0
        %1568 = vmatpush2.bf16.msra.mxu0 0
        %1569 = vmatprep.subr.bf16.mxu0 0
        %1570 = vmatpush2.bf16.msra.mxu0 0
        %1571 = vmatprep.mubr.bf16.mxu0 0
        %1572 = vmatmul.mubr.bf16.gmra.mxu0 %v1489
        %v1573 = vpop.f32.mrf.mxu0
        %v1574 = vadd.f32 %v1458, %v1573
        %v1575 = vpop.f32.mrf.mxu0
        %v1576 = vpop.f32.mrf.mxu0
        %v1577 = vpop.f32.mrf.mxu0
        %1578 = vdwg.mxu0
        %v1579 = vpack.c.bf16 %v1278, %v1278
        %v1580 = vpack.c.bf16 %v1285, %v1285
        %v1581 = vpack.c.bf16 %v1292, %v1292
        %v1582 = vpack.c.bf16 %v1299, %v1299
        %v1583 = vpack.c.bf16 %v1306, %v1306
        %v1584 = vpack.c.bf16 %v1313, %v1313
        %v1585 = vpack.c.bf16 %v1320, %v1320
        %v1586 = vpack.c.bf16 %v1327, %v1327
        %v1587 = vlaneseq
        %v1588 = vshrl.u32 %v1587, 7
        %v1589 = vsub.s32 0, %v1588
        %v1590 = vrot.slane %v316, %v1589
        %v1599 = vunpack.c.l.b16 %v1579
        %v1600 = vunpack.c.l.b16 %v1580
        %v1601 = vunpack.c.l.b16 %v1581
        %v1602 = vunpack.c.l.b16 %v1582
        %v1603 = vunpack.c.l.b16 %v1583
        %v1604 = vunpack.c.l.b16 %v1584
        %v1605 = vunpack.c.l.b16 %v1585
        %v1606 = vunpack.c.l.b16 %v1586
        %v1607 = vsel %vm498, %v1600, %v1599
        %v1608 = vsel %vm500, %v1601, %v1607
        %v1609 = vsel %vm502, %v1602, %v1608
        %v1610 = vsel %vm504, %v1603, %v1609
        %v1611 = vsel %vm506, %v1604, %v1610
        %v1612 = vsel %vm508, %v1605, %v1611
        %v1613 = vsel %vm510, %v1606, %v1612
        %v1614 = vpack.c.b16 %v1613, %v1613
        %v1616 = vunpack.c.h.b16 %v298
        %v1617 = vunpack.c.h.b16 %v299
        %v1618 = vunpack.c.h.b16 %v300
        %v1619 = vunpack.c.h.b16 %v301
        %v1620 = vunpack.c.h.b16 %v302
        %v1621 = vunpack.c.h.b16 %v303
        %v1622 = vunpack.c.h.b16 %v304
        %v1623 = vunpack.c.h.b16 %v305
        %v1624 = vunpack.c.h.b16 %v306
        %v1625 = vunpack.c.h.b16 %v307
        %v1626 = vunpack.c.h.b16 %v308
        %v1627 = vunpack.c.h.b16 %v309
        %v1628 = vunpack.c.h.b16 %v310
        %v1629 = vunpack.c.h.b16 %v311
        %v1630 = vunpack.c.h.b16 %v312
        %v1631 = vunpack.c.h.b16 %v313
        %v1632 = vpack.c.b16 %v1617, %v1616
        %v1633 = vpack.c.b16 %v1619, %v1618
        %v1634 = vpack.c.b16 %v1621, %v1620
        %v1635 = vpack.c.b16 %v1623, %v1622
        %v1636 = vpack.c.b16 %v1625, %v1624
        %v1637 = vpack.c.b16 %v1627, %v1626
        %v1638 = vpack.c.b16 %v1629, %v1628
        %v1639 = vpack.c.b16 %v1631, %v1630
        %1648 = vmatprep.subr.bf16.mxu0 0
        %1649 = vmatpush1.bf16.msra.mxu0 %v1639
        %1650 = vmatprep.subr.bf16.mxu0 0
        %1651 = vmatpush1.bf16.msra.mxu0 %v1638
        %1652 = vmatprep.subr.bf16.mxu0 0
        %1653 = vmatpush1.bf16.msra.mxu0 %v1637
        %1654 = vmatprep.subr.bf16.mxu0 0
        %1655 = vmatpush1.bf16.msra.mxu0 %v1636
        %1656 = vmatprep.subr.bf16.mxu0 0
        %1657 = vmatpush1.bf16.msra.mxu0 %v1635
        %1658 = vmatprep.subr.bf16.mxu0 0
        %1659 = vmatpush1.bf16.msra.mxu0 %v1634
        %1660 = vmatprep.subr.bf16.mxu0 0
        %1661 = vmatpush1.bf16.msra.mxu0 %v1633
        %1662 = vmatprep.subr.bf16.mxu0 0
        %1663 = vmatpush1.bf16.msra.mxu0 %v1632
        %1664 = vmatprep.subr.bf16.mxu0 0
        %1665 = vmatpush2.bf16.msra.mxu0 0
        %1666 = vmatprep.subr.bf16.mxu0 0
        %1667 = vmatpush2.bf16.msra.mxu0 0
        %1668 = vmatprep.subr.bf16.mxu0 0
        %1669 = vmatpush2.bf16.msra.mxu0 0
        %1670 = vmatprep.subr.bf16.mxu0 0
        %1671 = vmatpush2.bf16.msra.mxu0 0
        %1672 = vmatprep.subr.bf16.mxu0 0
        %1673 = vmatpush2.bf16.msra.mxu0 0
        %1674 = vmatprep.subr.bf16.mxu0 0
        %1675 = vmatpush2.bf16.msra.mxu0 0
        %1676 = vmatprep.subr.bf16.mxu0 0
        %1677 = vmatpush2.bf16.msra.mxu0 0
        %1678 = vmatprep.subr.bf16.mxu0 0
        %1679 = vmatpush2.bf16.msra.mxu0 0
        %1680 = vmatprep.mubr.bf16.mxu0 0
        %1681 = vmatmul.mubr.bf16.gmra.mxu0 %v1614
        %v1682 = vpop.f32.mrf.mxu0
        %v1683 = vadd.f32 %v1590, %v1682
        %v1684 = vpop.f32.mrf.mxu0
        %v1685 = vpop.f32.mrf.mxu0
        %v1686 = vpop.f32.mrf.mxu0
        %1687 = vdwg.mxu0
        %v1689 = vcombine.high %v1574, %v1574
        %v1691 = vunpack.c.l.s4 1966171168
        %v1692 = vunpack.c.0.s8 %v1691
        %v1693 = vlaneseq
        %v1694 = vshrl.u32 %v1693, 7
        %v1695 = vsub.s32 %v1692, %v1694
        %v1696 = vrot.slane %v1574, %v1695
        %v1698 = vunpack.c.l.s4 1966171168
        %v1699 = vunpack.c.0.s8 %v1698
        %v1700 = vlaneseq
        %v1701 = vshrl.u32 %v1700, 7
        %v1702 = vsub.s32 %v1699, %v1701
        %v1703 = vrot.slane %v1689, %v1702
        %v1704 = vcombine.high %v1696, %v1696
        %v1705 = vcombine.high %v1703, %v1703
        %v1707 = vunpack.c.l.s4 1966171168
        %v1708 = vunpack.c.0.s8 %v1707
        %v1709 = vlaneseq
        %v1710 = vshrl.u32 %v1709, 7
        %v1711 = vsub.s32 %v1708, %v1710
        %v1712 = vrot.slane %v1696, %v1711
        %v1714 = vunpack.c.l.s4 1966171168
        %v1715 = vunpack.c.0.s8 %v1714
        %v1716 = vlaneseq
        %v1717 = vshrl.u32 %v1716, 7
        %v1718 = vsub.s32 %v1715, %v1717
        %v1719 = vrot.slane %v1703, %v1718
        %v1721 = vunpack.c.l.s4 1966171168
        %v1722 = vunpack.c.0.s8 %v1721
        %v1723 = vlaneseq
        %v1724 = vshrl.u32 %v1723, 7
        %v1725 = vsub.s32 %v1722, %v1724
        %v1726 = vrot.slane %v1704, %v1725
        %v1728 = vunpack.c.l.s4 1966171168
        %v1729 = vunpack.c.0.s8 %v1728
        %v1730 = vlaneseq
        %v1731 = vshrl.u32 %v1730, 7
        %v1732 = vsub.s32 %v1729, %v1731
        %v1733 = vrot.slane %v1705, %v1732
        %v1734 = vcombine.high %v1712, %v1712
        %v1735 = vcombine.high %v1719, %v1719
        %v1736 = vcombine.high %v1726, %v1726
        %v1737 = vcombine.high %v1733, %v1733
        %v1738 = vlaneseq
        %v1739 = vshrl.u32 %v1738, 7
        %v1740 = vsub.s32 0, %v1739
        %v1741 = vrot.slane %v1712, %v1740
        %v1742 = vlaneseq
        %v1743 = vshrl.u32 %v1742, 7
        %v1744 = vsub.s32 0, %v1743
        %v1745 = vrot.slane %v1726, %v1744
        %v1746 = vlaneseq
        %v1747 = vshrl.u32 %v1746, 7
        %v1748 = vsub.s32 0, %v1747
        %v1749 = vrot.slane %v1734, %v1748
        %v1750 = vlaneseq
        %v1751 = vshrl.u32 %v1750, 7
        %v1752 = vsub.s32 0, %v1751
        %v1753 = vrot.slane %v1736, %v1752
        %v1754 = vlaneseq
        %v1755 = vshrl.u32 %v1754, 7
        %v1756 = vsub.s32 0, %v1755
        %v1757 = vrot.slane %v1719, %v1756
        %v1758 = vlaneseq
        %v1759 = vshrl.u32 %v1758, 7
        %v1760 = vsub.s32 0, %v1759
        %v1761 = vrot.slane %v1733, %v1760
        %v1762 = vlaneseq
        %v1763 = vshrl.u32 %v1762, 7
        %v1764 = vsub.s32 0, %v1763
        %v1765 = vrot.slane %v1735, %v1764
        %v1766 = vlaneseq
        %v1767 = vshrl.u32 %v1766, 7
        %v1768 = vsub.s32 0, %v1767
        %v1769 = vrot.slane %v1737, %v1768
        %v1778 = vmul.f32 %v1092, %v1741
        %v1779 = vmul.f32 %v1096, %v1741
        %v1780 = vmul.f32 %v1102, %v1745
        %v1781 = vmul.f32 %v1106, %v1745
        %v1782 = vmul.f32 %v1112, %v1749
        %v1783 = vmul.f32 %v1116, %v1749
        %v1784 = vmul.f32 %v1122, %v1753
        %v1785 = vmul.f32 %v1126, %v1753
        %v1786 = vmul.f32 %v1132, %v1757
        %v1787 = vmul.f32 %v1136, %v1757
        %v1788 = vmul.f32 %v1142, %v1761
        %v1789 = vmul.f32 %v1146, %v1761
        %v1790 = vmul.f32 %v1152, %v1765
        %v1791 = vmul.f32 %v1156, %v1765
        %v1792 = vmul.f32 %v1162, %v1769
        %v1793 = vmul.f32 %v1166, %v1769
        %v1794 = vpack.c.bf16 %v1779, %v1778
        %v1795 = vpack.c.bf16 %v1781, %v1780
        %v1796 = vpack.c.bf16 %v1783, %v1782
        %v1797 = vpack.c.bf16 %v1785, %v1784
        %v1798 = vpack.c.bf16 %v1787, %v1786
        %v1799 = vpack.c.bf16 %v1789, %v1788
        %v1800 = vpack.c.bf16 %v1791, %v1790
        %v1801 = vpack.c.bf16 %v1793, %v1792
        %v1818 = vunpack.c.l.b16 %v317
        %v1819 = vunpack.c.l.b16 %v318
        %v1820 = vunpack.c.l.b16 %v319
        %v1821 = vunpack.c.l.b16 %v320
        %v1822 = vunpack.c.l.b16 %v321
        %v1823 = vunpack.c.l.b16 %v322
        %v1824 = vunpack.c.l.b16 %v323
        %v1825 = vunpack.c.l.b16 %v324
        %v1826 = vunpack.c.l.b16 %v325
        %v1827 = vunpack.c.l.b16 %v326
        %v1828 = vunpack.c.l.b16 %v327
        %v1829 = vunpack.c.l.b16 %v328
        %v1830 = vunpack.c.l.b16 %v329
        %v1831 = vunpack.c.l.b16 %v330
        %v1832 = vunpack.c.l.b16 %v331
        %v1833 = vunpack.c.l.b16 %v332
        %v1834 = vpack.c.b16 %v1819, %v1818
        %v1835 = vpack.c.b16 %v1821, %v1820
        %v1836 = vpack.c.b16 %v1823, %v1822
        %v1837 = vpack.c.b16 %v1825, %v1824
        %v1838 = vpack.c.b16 %v1827, %v1826
        %v1839 = vpack.c.b16 %v1829, %v1828
        %v1840 = vpack.c.b16 %v1831, %v1830
        %v1841 = vpack.c.b16 %v1833, %v1832
        %1850 = vmatprep.subr.bf16.mxu0 0
        %1851 = vmatpush1.bf16.msra.mxu0 %v1841
        %1852 = vmatprep.subr.bf16.mxu0 0
        %1853 = vmatpush1.bf16.msra.mxu0 %v1840
        %1854 = vmatprep.subr.bf16.mxu0 0
        %1855 = vmatpush1.bf16.msra.mxu0 %v1839
        %1856 = vmatprep.subr.bf16.mxu0 0
        %1857 = vmatpush1.bf16.msra.mxu0 %v1838
        %1858 = vmatprep.subr.bf16.mxu0 0
        %1859 = vmatpush1.bf16.msra.mxu0 %v1837
        %1860 = vmatprep.subr.bf16.mxu0 0
        %1861 = vmatpush1.bf16.msra.mxu0 %v1836
        %1862 = vmatprep.subr.bf16.mxu0 0
        %1863 = vmatpush1.bf16.msra.mxu0 %v1835
        %1864 = vmatprep.subr.bf16.mxu0 0
        %1865 = vmatpush1.bf16.msra.mxu0 %v1834
        %1866 = vmatprep.subr.bf16.mxu0 0
        %1867 = vmatpush2.bf16.msra.mxu0 0
        %1868 = vmatprep.subr.bf16.mxu0 0
        %1869 = vmatpush2.bf16.msra.mxu0 0
        %1870 = vmatprep.subr.bf16.mxu0 0
        %1871 = vmatpush2.bf16.msra.mxu0 0
        %1872 = vmatprep.subr.bf16.mxu0 0
        %1873 = vmatpush2.bf16.msra.mxu0 0
        %1874 = vmatprep.subr.bf16.mxu0 0
        %1875 = vmatpush2.bf16.msra.mxu0 0
        %1876 = vmatprep.subr.bf16.mxu0 0
        %1877 = vmatpush2.bf16.msra.mxu0 0
        %1878 = vmatprep.subr.bf16.mxu0 0
        %1879 = vmatpush2.bf16.msra.mxu0 0
        %1880 = vmatprep.subr.bf16.mxu0 0
        %1881 = vmatpush2.bf16.msra.mxu0 0
        %1882 = vmatprep.mubr.bf16.mxu0 0
        %1883 = vmatmul.mubr.bf16.gmra.mxu0 %v1794
        %v1884 = vpop.f32.mrf.mxu0
        %v1885 = vadd.f32 0.0, %v1884
        %v1886 = vpop.f32.mrf.mxu0
        %v1887 = vpop.f32.mrf.mxu0
        %v1888 = vadd.f32 0.0, %v1887
        %v1889 = vpop.f32.mrf.mxu0
        %1890 = vmatprep.mubr.bf16.mxu0 0
        %1891 = vmatmul.mubr.bf16.gmra.mxu0 %v1795
        %v1892 = vpop.f32.mrf.mxu0
        %v1893 = vadd.f32 0.0, %v1892
        %v1894 = vpop.f32.mrf.mxu0
        %v1895 = vpop.f32.mrf.mxu0
        %v1896 = vadd.f32 0.0, %v1895
        %v1897 = vpop.f32.mrf.mxu0
        %1898 = vmatprep.mubr.bf16.mxu0 0
        %1899 = vmatmul.mubr.bf16.gmra.mxu0 %v1796
        %v1900 = vpop.f32.mrf.mxu0
        %v1901 = vadd.f32 0.0, %v1900
        %v1902 = vpop.f32.mrf.mxu0
        %v1903 = vpop.f32.mrf.mxu0
        %v1904 = vadd.f32 0.0, %v1903
        %v1905 = vpop.f32.mrf.mxu0
        %1906 = vmatprep.mubr.bf16.mxu0 0
        %1907 = vmatmul.mubr.bf16.gmra.mxu0 %v1797
        %v1908 = vpop.f32.mrf.mxu0
        %v1909 = vadd.f32 0.0, %v1908
        %v1910 = vpop.f32.mrf.mxu0
        %v1911 = vpop.f32.mrf.mxu0
        %v1912 = vadd.f32 0.0, %v1911
        %v1913 = vpop.f32.mrf.mxu0
        %1914 = vmatprep.mubr.bf16.mxu0 0
        %1915 = vmatmul.mubr.bf16.gmra.mxu0 %v1798
        %v1916 = vpop.f32.mrf.mxu0
        %v1917 = vadd.f32 0.0, %v1916
        %v1918 = vpop.f32.mrf.mxu0
        %v1919 = vpop.f32.mrf.mxu0
        %v1920 = vadd.f32 0.0, %v1919
        %v1921 = vpop.f32.mrf.mxu0
        %1922 = vmatprep.mubr.bf16.mxu0 0
        %1923 = vmatmul.mubr.bf16.gmra.mxu0 %v1799
        %v1924 = vpop.f32.mrf.mxu0
        %v1925 = vadd.f32 0.0, %v1924
        %v1926 = vpop.f32.mrf.mxu0
        %v1927 = vpop.f32.mrf.mxu0
        %v1928 = vadd.f32 0.0, %v1927
        %v1929 = vpop.f32.mrf.mxu0
        %1930 = vmatprep.mubr.bf16.mxu0 0
        %1931 = vmatmul.mubr.bf16.gmra.mxu0 %v1800
        %v1932 = vpop.f32.mrf.mxu0
        %v1933 = vadd.f32 0.0, %v1932
        %v1934 = vpop.f32.mrf.mxu0
        %v1935 = vpop.f32.mrf.mxu0
        %v1936 = vadd.f32 0.0, %v1935
        %v1937 = vpop.f32.mrf.mxu0
        %1938 = vmatprep.mubr.bf16.mxu0 0
        %1939 = vmatmul.mubr.bf16.gmra.mxu0 %v1801
        %v1940 = vpop.f32.mrf.mxu0
        %v1941 = vadd.f32 0.0, %v1940
        %v1942 = vpop.f32.mrf.mxu0
        %v1943 = vpop.f32.mrf.mxu0
        %v1944 = vadd.f32 0.0, %v1943
        %v1945 = vpop.f32.mrf.mxu0
        %1946 = vdwg.mxu0
        %v1948 = vsel %vm513, %v741, 0
        %1950 = vmatprep.subr.mxu0 0.0
        %1951 = vmatpush1.msra.mxu0 0.0
        %1952 = vmatprep.subr.mxu0 0.0
        %1953 = vmatpush1.msra.mxu0 0.0
        %1954 = vmatprep.subr.mxu0 0.0
        %1955 = vmatpush1.msra.mxu0 0.0
        %1956 = vmatprep.subr.mxu0 0.0
        %1957 = vmatpush1.msra.mxu0 0.0
        %1958 = vmatprep.subr.mxu0 0.0
        %1959 = vmatpush1.msra.mxu0 0.0
        %1960 = vmatprep.subr.mxu0 0.0
        %1961 = vmatpush1.msra.mxu0 0.0
        %1962 = vmatprep.subr.mxu0 0.0
        %1963 = vmatpush1.msra.mxu0 0.0
        %1964 = vmatprep.subr.mxu0 0.0
        %1965 = vmatpush1.msra.mxu0 0.0
        %1966 = vmatprep.subr.mxu0 0.0
        %1967 = vmatpush1.msra.mxu0 0.0
        %1968 = vmatprep.subr.mxu0 0.0
        %1969 = vmatpush1.msra.mxu0 0.0
        %1970 = vmatprep.subr.mxu0 0.0
        %1971 = vmatpush1.msra.mxu0 0.0
        %1972 = vmatprep.subr.mxu0 0.0
        %1973 = vmatpush1.msra.mxu0 0.0
        %1974 = vmatprep.subr.mxu0 0.0
        %1975 = vmatpush1.msra.mxu0 0.0
        %1976 = vmatprep.subr.mxu0 0.0
        %1977 = vmatpush1.msra.mxu0 0.0
        %1978 = vmatprep.subr.mxu0 0.0
        %1979 = vmatpush1.msra.mxu0 %v353
        %1980 = vmatprep.subr.mxu0 0.0
        %1981 = vmatpush1.msra.mxu0 %v352
        %1982 = vmatprep.subr.mxu0 0.0
        %1983 = vmatpush2.msra.mxu0 0.0
        %1984 = vmatprep.subr.mxu0 0.0
        %1985 = vmatpush2.msra.mxu0 0.0
        %1986 = vmatprep.subr.mxu0 0.0
        %1987 = vmatpush2.msra.mxu0 0.0
        %1988 = vmatprep.subr.mxu0 0.0
        %1989 = vmatpush2.msra.mxu0 0.0
        %1990 = vmatprep.subr.mxu0 0.0
        %1991 = vmatpush2.msra.mxu0 0.0
        %1992 = vmatprep.subr.mxu0 0.0
        %1993 = vmatpush2.msra.mxu0 0.0
        %1994 = vmatprep.subr.mxu0 0.0
        %1995 = vmatpush2.msra.mxu0 0.0
        %1996 = vmatprep.subr.mxu0 0.0
        %1997 = vmatpush2.msra.mxu0 0.0
        %1998 = vmatprep.subr.mxu0 0.0
        %1999 = vmatpush2.msra.mxu0 0.0
        %2000 = vmatprep.subr.mxu0 0.0
        %2001 = vmatpush2.msra.mxu0 0.0
        %2002 = vmatprep.subr.mxu0 0.0
        %2003 = vmatpush2.msra.mxu0 0.0
        %2004 = vmatprep.subr.mxu0 0.0
        %2005 = vmatpush2.msra.mxu0 0.0
        %2006 = vmatprep.subr.mxu0 0.0
        %2007 = vmatpush2.msra.mxu0 0.0
        %2008 = vmatprep.subr.mxu0 0.0
        %2009 = vmatpush2.msra.mxu0 0.0
        %2010 = vmatprep.subr.mxu0 0.0
        %2011 = vmatpush2.msra.mxu0 0.0
        %2012 = vmatprep.subr.mxu0 0.0
        %2013 = vmatpush2.msra.mxu0 0.0
        %2014 = vmatprep.mubr.f32.mxu0 0.0
        %2015 = vmatmul.mubr.f32.gmra.mxu0 %v1948
        %v2016 = vpop.f32.mrf.mxu0
        %v2017 = vadd.f32 0.0, %v2016
        %v2018 = vpop.f32.mrf.mxu0
        %2019 = vdwg.mxu0
        %v2020 = vlaneseq
        %v2021 = vshrl.u32 %v2020, 7
        %v2022 = vsub.s32 0, %v2021
        %v2023 = vrot.slane %v2017, %v2022
        %2025 = vbcast.lane.b32.xlu0 %v2023, 256
        %v2026 = vpop.permute.xlu0 %2025
        %s2028 = sor.u32 256, 8
        %2029 = vbcast.lane.b32.xlu0 %v2023, %s2028
        %v2030 = vpop.permute.xlu0 %2029
        %v2031 = vlaneseq
        %v2032 = vshrl.u32 %v2031, 7
        %v2033 = vsub.s32 1, %v2032
        %v2034 = vrot.slane %v2017, %v2033
        %2036 = vbcast.lane.b32.xlu0 %v2034, 256
        %v2037 = vpop.permute.xlu0 %2036
        %s2039 = sor.u32 256, 8
        %2040 = vbcast.lane.b32.xlu0 %v2034, %s2039
        %v2041 = vpop.permute.xlu0 %2040
        %v2042 = vlaneseq
        %v2043 = vshrl.u32 %v2042, 7
        %v2044 = vsub.s32 2, %v2043
        %v2045 = vrot.slane %v2017, %v2044
        %2047 = vbcast.lane.b32.xlu0 %v2045, 256
        %v2048 = vpop.permute.xlu0 %2047
        %s2050 = sor.u32 256, 8
        %2051 = vbcast.lane.b32.xlu0 %v2045, %s2050
        %v2052 = vpop.permute.xlu0 %2051
        %v2053 = vlaneseq
        %v2054 = vshrl.u32 %v2053, 7
        %v2055 = vsub.s32 3, %v2054
        %v2056 = vrot.slane %v2017, %v2055
        %2058 = vbcast.lane.b32.xlu0 %v2056, 256
        %v2059 = vpop.permute.xlu0 %2058
        %s2061 = sor.u32 256, 8
        %2062 = vbcast.lane.b32.xlu0 %v2056, %s2061
        %v2063 = vpop.permute.xlu0 %2062
        %v2064 = vlaneseq
        %v2065 = vshrl.u32 %v2064, 7
        %v2066 = vsub.s32 4, %v2065
        %v2067 = vrot.slane %v2017, %v2066
        %2069 = vbcast.lane.b32.xlu0 %v2067, 256
        %v2070 = vpop.permute.xlu0 %2069
        %s2072 = sor.u32 256, 8
        %2073 = vbcast.lane.b32.xlu0 %v2067, %s2072
        %v2074 = vpop.permute.xlu0 %2073
        %v2075 = vlaneseq
        %v2076 = vshrl.u32 %v2075, 7
        %v2077 = vsub.s32 5, %v2076
        %v2078 = vrot.slane %v2017, %v2077
        %2080 = vbcast.lane.b32.xlu0 %v2078, 256
        %v2081 = vpop.permute.xlu0 %2080
        %s2083 = sor.u32 256, 8
        %2084 = vbcast.lane.b32.xlu0 %v2078, %s2083
        %v2085 = vpop.permute.xlu0 %2084
        %v2086 = vlaneseq
        %v2087 = vshrl.u32 %v2086, 7
        %v2088 = vsub.s32 6, %v2087
        %v2089 = vrot.slane %v2017, %v2088
        %2091 = vbcast.lane.b32.xlu0 %v2089, 256
        %v2092 = vpop.permute.xlu0 %2091
        %s2094 = sor.u32 256, 8
        %2095 = vbcast.lane.b32.xlu0 %v2089, %s2094
        %v2096 = vpop.permute.xlu0 %2095
        %v2097 = vlaneseq
        %v2098 = vshrl.u32 %v2097, 7
        %v2099 = vsub.s32 7, %v2098
        %v2100 = vrot.slane %v2017, %v2099
        %2102 = vbcast.lane.b32.xlu0 %v2100, 256
        %v2103 = vpop.permute.xlu0 %2102
        %s2105 = sor.u32 256, 8
        %2106 = vbcast.lane.b32.xlu0 %v2100, %s2105
        %v2107 = vpop.permute.xlu0 %2106
        %v2108 = vadd.f32 %v1885, %v2026
        %v2109 = vadd.f32 %v1888, %v2030
        %v2110 = vadd.f32 %v1893, %v2037
        %v2111 = vadd.f32 %v1896, %v2041
        %v2112 = vadd.f32 %v1901, %v2048
        %v2113 = vadd.f32 %v1904, %v2052
        %v2114 = vadd.f32 %v1909, %v2059
        %v2115 = vadd.f32 %v1912, %v2063
        %v2116 = vadd.f32 %v1917, %v2070
        %v2117 = vadd.f32 %v1920, %v2074
        %v2118 = vadd.f32 %v1925, %v2081
        %v2119 = vadd.f32 %v1928, %v2085
        %v2120 = vadd.f32 %v1933, %v2092
        %v2121 = vadd.f32 %v1936, %v2096
        %v2122 = vadd.f32 %v1941, %v2103
        %v2123 = vadd.f32 %v1944, %v2107
        %v2124 = vmax.f32 %v2108, %v2109
        %v2125 = vrot.slane %v2124, 4
        %v2126 = vmax.f32 %v2124, %v2125
        %v2127 = vrot.slane %v2126, 2
        %v2128 = vmax.f32 %v2126, %v2127
        %v2129 = vrot.slane %v2128, 1
        %v2130 = vmax.f32 %v2128, %v2129
        %v2131 = vmax.f32 %v2110, %v2111
        %v2132 = vrot.slane %v2131, 4
        %v2133 = vmax.f32 %v2131, %v2132
        %v2134 = vrot.slane %v2133, 2
        %v2135 = vmax.f32 %v2133, %v2134
        %v2136 = vrot.slane %v2135, 1
        %v2137 = vmax.f32 %v2135, %v2136
        %v2138 = vmax.f32 %v2112, %v2113
        %v2139 = vrot.slane %v2138, 4
        %v2140 = vmax.f32 %v2138, %v2139
        %v2141 = vrot.slane %v2140, 2
        %v2142 = vmax.f32 %v2140, %v2141
        %v2143 = vrot.slane %v2142, 1
        %v2144 = vmax.f32 %v2142, %v2143
        %v2145 = vmax.f32 %v2114, %v2115
        %v2146 = vrot.slane %v2145, 4
        %v2147 = vmax.f32 %v2145, %v2146
        %v2148 = vrot.slane %v2147, 2
        %v2149 = vmax.f32 %v2147, %v2148
        %v2150 = vrot.slane %v2149, 1
        %v2151 = vmax.f32 %v2149, %v2150
        %v2152 = vmax.f32 %v2116, %v2117
        %v2153 = vrot.slane %v2152, 4
        %v2154 = vmax.f32 %v2152, %v2153
        %v2155 = vrot.slane %v2154, 2
        %v2156 = vmax.f32 %v2154, %v2155
        %v2157 = vrot.slane %v2156, 1
        %v2158 = vmax.f32 %v2156, %v2157
        %v2159 = vmax.f32 %v2118, %v2119
        %v2160 = vrot.slane %v2159, 4
        %v2161 = vmax.f32 %v2159, %v2160
        %v2162 = vrot.slane %v2161, 2
        %v2163 = vmax.f32 %v2161, %v2162
        %v2164 = vrot.slane %v2163, 1
        %v2165 = vmax.f32 %v2163, %v2164
        %v2166 = vmax.f32 %v2120, %v2121
        %v2167 = vrot.slane %v2166, 4
        %v2168 = vmax.f32 %v2166, %v2167
        %v2169 = vrot.slane %v2168, 2
        %v2170 = vmax.f32 %v2168, %v2169
        %v2171 = vrot.slane %v2170, 1
        %v2172 = vmax.f32 %v2170, %v2171
        %v2173 = vmax.f32 %v2122, %v2123
        %v2174 = vrot.slane %v2173, 4
        %v2175 = vmax.f32 %v2173, %v2174
        %v2176 = vrot.slane %v2175, 2
        %v2177 = vmax.f32 %v2175, %v2176
        %v2178 = vrot.slane %v2177, 1
        %v2179 = vmax.f32 %v2177, %v2178
        %v2180 = vsub.f32 %v2108, %v2130
        %v2181 = vsub.f32 %v2109, %v2130
        %v2182 = vsub.f32 %v2110, %v2137
        %v2183 = vsub.f32 %v2111, %v2137
        %v2184 = vsub.f32 %v2112, %v2144
        %v2185 = vsub.f32 %v2113, %v2144
        %v2186 = vsub.f32 %v2114, %v2151
        %v2187 = vsub.f32 %v2115, %v2151
        %v2188 = vsub.f32 %v2116, %v2158
        %v2189 = vsub.f32 %v2117, %v2158
        %v2190 = vsub.f32 %v2118, %v2165
        %v2191 = vsub.f32 %v2119, %v2165
        %v2192 = vsub.f32 %v2120, %v2172
        %v2193 = vsub.f32 %v2121, %v2172
        %v2194 = vsub.f32 %v2122, %v2179
        %v2195 = vsub.f32 %v2123, %v2179
        %v2196 = vmul.f32 %v2180, 1.442695
        %v2197 = vpow.pop %v2196
        %v2198 = vmul.f32 %v2181, 1.442695
        %v2199 = vpow.pop %v2198
        %v2200 = vmul.f32 %v2182, 1.442695
        %v2201 = vpow.pop %v2200
        %v2202 = vmul.f32 %v2183, 1.442695
        %v2203 = vpow.pop %v2202
        %v2204 = vmul.f32 %v2184, 1.442695
        %v2205 = vpow.pop %v2204
        %v2206 = vmul.f32 %v2185, 1.442695
        %v2207 = vpow.pop %v2206
        %v2208 = vmul.f32 %v2186, 1.442695
        %v2209 = vpow.pop %v2208
        %v2210 = vmul.f32 %v2187, 1.442695
        %v2211 = vpow.pop %v2210
        %v2212 = vmul.f32 %v2188, 1.442695
        %v2213 = vpow.pop %v2212
        %v2214 = vmul.f32 %v2189, 1.442695
        %v2215 = vpow.pop %v2214
        %v2216 = vmul.f32 %v2190, 1.442695
        %v2217 = vpow.pop %v2216
        %v2218 = vmul.f32 %v2191, 1.442695
        %v2219 = vpow.pop %v2218
        %v2220 = vmul.f32 %v2192, 1.442695
        %v2221 = vpow.pop %v2220
        %v2222 = vmul.f32 %v2193, 1.442695
        %v2223 = vpow.pop %v2222
        %v2224 = vmul.f32 %v2194, 1.442695
        %v2225 = vpow.pop %v2224
        %v2226 = vmul.f32 %v2195, 1.442695
        %v2227 = vpow.pop %v2226
        %v2228 = vadd.f32 %v2197, %v2199
        %v2229 = vrot.slane %v2228, 4
        %v2230 = vadd.f32 %v2228, %v2229
        %v2231 = vrot.slane %v2230, 2
        %v2232 = vadd.f32 %v2230, %v2231
        %v2233 = vrot.slane %v2232, 1
        %v2234 = vadd.f32 %v2232, %v2233
        %v2235 = vadd.f32 %v2201, %v2203
        %v2236 = vrot.slane %v2235, 4
        %v2237 = vadd.f32 %v2235, %v2236
        %v2238 = vrot.slane %v2237, 2
        %v2239 = vadd.f32 %v2237, %v2238
        %v2240 = vrot.slane %v2239, 1
        %v2241 = vadd.f32 %v2239, %v2240
        %v2242 = vadd.f32 %v2205, %v2207
        %v2243 = vrot.slane %v2242, 4
        %v2244 = vadd.f32 %v2242, %v2243
        %v2245 = vrot.slane %v2244, 2
        %v2246 = vadd.f32 %v2244, %v2245
        %v2247 = vrot.slane %v2246, 1
        %v2248 = vadd.f32 %v2246, %v2247
        %v2249 = vadd.f32 %v2209, %v2211
        %v2250 = vrot.slane %v2249, 4
        %v2251 = vadd.f32 %v2249, %v2250
        %v2252 = vrot.slane %v2251, 2
        %v2253 = vadd.f32 %v2251, %v2252
        %v2254 = vrot.slane %v2253, 1
        %v2255 = vadd.f32 %v2253, %v2254
        %v2256 = vadd.f32 %v2213, %v2215
        %v2257 = vrot.slane %v2256, 4
        %v2258 = vadd.f32 %v2256, %v2257
        %v2259 = vrot.slane %v2258, 2
        %v2260 = vadd.f32 %v2258, %v2259
        %v2261 = vrot.slane %v2260, 1
        %v2262 = vadd.f32 %v2260, %v2261
        %v2263 = vadd.f32 %v2217, %v2219
        %v2264 = vrot.slane %v2263, 4
        %v2265 = vadd.f32 %v2263, %v2264
        %v2266 = vrot.slane %v2265, 2
        %v2267 = vadd.f32 %v2265, %v2266
        %v2268 = vrot.slane %v2267, 1
        %v2269 = vadd.f32 %v2267, %v2268
        %v2270 = vadd.f32 %v2221, %v2223
        %v2271 = vrot.slane %v2270, 4
        %v2272 = vadd.f32 %v2270, %v2271
        %v2273 = vrot.slane %v2272, 2
        %v2274 = vadd.f32 %v2272, %v2273
        %v2275 = vrot.slane %v2274, 1
        %v2276 = vadd.f32 %v2274, %v2275
        %v2277 = vadd.f32 %v2225, %v2227
        %v2278 = vrot.slane %v2277, 4
        %v2279 = vadd.f32 %v2277, %v2278
        %v2280 = vrot.slane %v2279, 2
        %v2281 = vadd.f32 %v2279, %v2280
        %v2282 = vrot.slane %v2281, 1
        %v2283 = vadd.f32 %v2281, %v2282
        %v2284 = vrcp.pop %v2234
        %v2285 = vrcp.pop %v2241
        %v2286 = vrcp.pop %v2248
        %v2287 = vrcp.pop %v2255
        %v2288 = vrcp.pop %v2262
        %v2289 = vrcp.pop %v2269
        %v2290 = vrcp.pop %v2276
        %v2291 = vrcp.pop %v2283
        %v2292 = vmul.f32 %v2197, %v2284
        %v2293 = vmul.f32 %v2199, %v2284
        %v2294 = vmul.f32 %v2201, %v2285
        %v2295 = vmul.f32 %v2203, %v2285
        %v2296 = vmul.f32 %v2205, %v2286
        %v2297 = vmul.f32 %v2207, %v2286
        %v2298 = vmul.f32 %v2209, %v2287
        %v2299 = vmul.f32 %v2211, %v2287
        %v2300 = vmul.f32 %v2213, %v2288
        %v2301 = vmul.f32 %v2215, %v2288
        %v2302 = vmul.f32 %v2217, %v2289
        %v2303 = vmul.f32 %v2219, %v2289
        %v2304 = vmul.f32 %v2221, %v2290
        %v2305 = vmul.f32 %v2223, %v2290
        %v2306 = vmul.f32 %v2225, %v2291
        %v2307 = vmul.f32 %v2227, %v2291
        %v2308 = vmul.f32 %v2292, %v1090
        %v2309 = vmul.f32 %v2293, %v1094
        %v2310 = vmul.f32 %v2294, %v1100
        %v2311 = vmul.f32 %v2295, %v1104
        %v2312 = vmul.f32 %v2296, %v1110
        %v2313 = vmul.f32 %v2297, %v1114
        %v2314 = vmul.f32 %v2298, %v1120
        %v2315 = vmul.f32 %v2299, %v1124
        %v2316 = vmul.f32 %v2300, %v1130
        %v2317 = vmul.f32 %v2301, %v1134
        %v2318 = vmul.f32 %v2302, %v1140
        %v2319 = vmul.f32 %v2303, %v1144
        %v2320 = vmul.f32 %v2304, %v1150
        %v2321 = vmul.f32 %v2305, %v1154
        %v2322 = vmul.f32 %v2306, %v1160
        %v2323 = vmul.f32 %v2307, %v1164
        %v2324 = vadd.f32 %v2308, %v2309
        %v2325 = vrot.slane %v2324, 4
        %v2326 = vadd.f32 %v2324, %v2325
        %v2327 = vrot.slane %v2326, 2
        %v2328 = vadd.f32 %v2326, %v2327
        %v2329 = vrot.slane %v2328, 1
        %v2330 = vadd.f32 %v2328, %v2329
        %v2331 = vadd.f32 %v2310, %v2311
        %v2332 = vrot.slane %v2331, 4
        %v2333 = vadd.f32 %v2331, %v2332
        %v2334 = vrot.slane %v2333, 2
        %v2335 = vadd.f32 %v2333, %v2334
        %v2336 = vrot.slane %v2335, 1
        %v2337 = vadd.f32 %v2335, %v2336
        %v2338 = vadd.f32 %v2312, %v2313
        %v2339 = vrot.slane %v2338, 4
        %v2340 = vadd.f32 %v2338, %v2339
        %v2341 = vrot.slane %v2340, 2
        %v2342 = vadd.f32 %v2340, %v2341
        %v2343 = vrot.slane %v2342, 1
        %v2344 = vadd.f32 %v2342, %v2343
        %v2345 = vadd.f32 %v2314, %v2315
        %v2346 = vrot.slane %v2345, 4
        %v2347 = vadd.f32 %v2345, %v2346
        %v2348 = vrot.slane %v2347, 2
        %v2349 = vadd.f32 %v2347, %v2348
        %v2350 = vrot.slane %v2349, 1
        %v2351 = vadd.f32 %v2349, %v2350
        %v2352 = vadd.f32 %v2316, %v2317
        %v2353 = vrot.slane %v2352, 4
        %v2354 = vadd.f32 %v2352, %v2353
        %v2355 = vrot.slane %v2354, 2
        %v2356 = vadd.f32 %v2354, %v2355
        %v2357 = vrot.slane %v2356, 1
        %v2358 = vadd.f32 %v2356, %v2357
        %v2359 = vadd.f32 %v2318, %v2319
        %v2360 = vrot.slane %v2359, 4
        %v2361 = vadd.f32 %v2359, %v2360
        %v2362 = vrot.slane %v2361, 2
        %v2363 = vadd.f32 %v2361, %v2362
        %v2364 = vrot.slane %v2363, 1
        %v2365 = vadd.f32 %v2363, %v2364
        %v2366 = vadd.f32 %v2320, %v2321
        %v2367 = vrot.slane %v2366, 4
        %v2368 = vadd.f32 %v2366, %v2367
        %v2369 = vrot.slane %v2368, 2
        %v2370 = vadd.f32 %v2368, %v2369
        %v2371 = vrot.slane %v2370, 1
        %v2372 = vadd.f32 %v2370, %v2371
        %v2373 = vadd.f32 %v2322, %v2323
        %v2374 = vrot.slane %v2373, 4
        %v2375 = vadd.f32 %v2373, %v2374
        %v2376 = vrot.slane %v2375, 2
        %v2377 = vadd.f32 %v2375, %v2376
        %v2378 = vrot.slane %v2377, 1
        %v2379 = vadd.f32 %v2377, %v2378
        %v2381 = vrot.slane %v1683, 1
        %v2382 = vrot.slane %v1683, 2
        %v2383 = vrot.slane %v1683, 3
        %v2384 = vrot.slane %v1683, 4
        %v2385 = vrot.slane %v1683, 5
        %v2386 = vrot.slane %v1683, 6
        %v2387 = vrot.slane %v1683, 7
        %v2396 = vadd.f32 %v2330, %v1683
        %v2397 = vadd.f32 %v2337, %v2381
        %v2398 = vadd.f32 %v2344, %v2382
        %v2399 = vadd.f32 %v2351, %v2383
        %v2400 = vadd.f32 %v2358, %v2384
        %v2401 = vadd.f32 %v2365, %v2385
        %v2402 = vadd.f32 %v2372, %v2386
        %v2403 = vadd.f32 %v2379, %v2387
        %v2404 = vmax.f32 %v2396, 0.0
        %v2405 = vmax.f32 %v2397, 0.0
        %v2406 = vmax.f32 %v2398, 0.0
        %v2407 = vmax.f32 %v2399, 0.0
        %v2408 = vmax.f32 %v2400, 0.0
        %v2409 = vmax.f32 %v2401, 0.0
        %v2410 = vmax.f32 %v2402, 0.0
        %v2411 = vmax.f32 %v2403, 0.0
        %v2412 = vpack.c.bf16 %v2404, %v2404
        %v2413 = vpack.c.bf16 %v2405, %v2405
        %v2414 = vpack.c.bf16 %v2406, %v2406
        %v2415 = vpack.c.bf16 %v2407, %v2407
        %v2416 = vpack.c.bf16 %v2408, %v2408
        %v2417 = vpack.c.bf16 %v2409, %v2409
        %v2418 = vpack.c.bf16 %v2410, %v2410
        %v2419 = vpack.c.bf16 %v2411, %v2411
        %v2420 = vlaneseq
        %v2421 = vshrl.u32 %v2420, 7
        %v2422 = vsub.s32 0, %v2421
        %v2423 = vrot.slane %v350, %v2422
        %v2432 = vunpack.c.l.b16 %v2412
        %v2433 = vunpack.c.l.b16 %v2413
        %v2434 = vunpack.c.l.b16 %v2414
        %v2435 = vunpack.c.l.b16 %v2415
        %v2436 = vunpack.c.l.b16 %v2416
        %v2437 = vunpack.c.l.b16 %v2417
        %v2438 = vunpack.c.l.b16 %v2418
        %v2439 = vunpack.c.l.b16 %v2419
        %v2440 = vrot.slane %v2433, 7
        %v2441 = vsel %vm498, %v2440, %v2432
        %v2442 = vrot.slane %v2434, 6
        %v2443 = vsel %vm500, %v2442, %v2441
        %v2444 = vrot.slane %v2435, 5
        %v2445 = vsel %vm502, %v2444, %v2443
        %v2446 = vrot.slane %v2436, 4
        %v2447 = vsel %vm504, %v2446, %v2445
        %v2448 = vrot.slane %v2437, 3
        %v2449 = vsel %vm506, %v2448, %v2447
        %v2450 = vrot.slane %v2438, 2
        %v2451 = vsel %vm508, %v2450, %v2449
        %v2452 = vrot.slane %v2439, 1
        %v2453 = vsel %vm510, %v2452, %v2451
        %v2454 = vpack.c.b16 %v2453, %v2453
        %v2472 = vunpack.c.l.b16 %v333
        %v2473 = vunpack.c.l.b16 %v334
        %v2474 = vunpack.c.l.b16 %v335
        %v2475 = vunpack.c.l.b16 %v336
        %v2476 = vunpack.c.l.b16 %v337
        %v2477 = vunpack.c.l.b16 %v338
        %v2478 = vunpack.c.l.b16 %v339
        %v2479 = vunpack.c.l.b16 %v340
        %v2480 = vunpack.c.l.b16 %v341
        %v2481 = vunpack.c.l.b16 %v342
        %v2482 = vunpack.c.l.b16 %v343
        %v2483 = vunpack.c.l.b16 %v344
        %v2484 = vunpack.c.l.b16 %v345
        %v2485 = vunpack.c.l.b16 %v346
        %v2486 = vunpack.c.l.b16 %v347
        %v2487 = vunpack.c.l.b16 %v348
        %v2488 = vpack.c.b16 %v2473, %v2472
        %v2489 = vpack.c.b16 %v2475, %v2474
        %v2490 = vpack.c.b16 %v2477, %v2476
        %v2491 = vpack.c.b16 %v2479, %v2478
        %v2492 = vpack.c.b16 %v2481, %v2480
        %v2493 = vpack.c.b16 %v2483, %v2482
        %v2494 = vpack.c.b16 %v2485, %v2484
        %v2495 = vpack.c.b16 %v2487, %v2486
        %2504 = vmatprep.subr.bf16.mxu0 0
        %2505 = vmatpush1.bf16.msra.mxu0 %v2495
        %2506 = vmatprep.subr.bf16.mxu0 0
        %2507 = vmatpush1.bf16.msra.mxu0 %v2494
        %2508 = vmatprep.subr.bf16.mxu0 0
        %2509 = vmatpush1.bf16.msra.mxu0 %v2493
        %2510 = vmatprep.subr.bf16.mxu0 0
        %2511 = vmatpush1.bf16.msra.mxu0 %v2492
        %2512 = vmatprep.subr.bf16.mxu0 0
        %2513 = vmatpush1.bf16.msra.mxu0 %v2491
        %2514 = vmatprep.subr.bf16.mxu0 0
        %2515 = vmatpush1.bf16.msra.mxu0 %v2490
        %2516 = vmatprep.subr.bf16.mxu0 0
        %2517 = vmatpush1.bf16.msra.mxu0 %v2489
        %2518 = vmatprep.subr.bf16.mxu0 0
        %2519 = vmatpush1.bf16.msra.mxu0 %v2488
        %2520 = vmatprep.subr.bf16.mxu0 0
        %2521 = vmatpush2.bf16.msra.mxu0 0
        %2522 = vmatprep.subr.bf16.mxu0 0
        %2523 = vmatpush2.bf16.msra.mxu0 0
        %2524 = vmatprep.subr.bf16.mxu0 0
        %2525 = vmatpush2.bf16.msra.mxu0 0
        %2526 = vmatprep.subr.bf16.mxu0 0
        %2527 = vmatpush2.bf16.msra.mxu0 0
        %2528 = vmatprep.subr.bf16.mxu0 0
        %2529 = vmatpush2.bf16.msra.mxu0 0
        %2530 = vmatprep.subr.bf16.mxu0 0
        %2531 = vmatpush2.bf16.msra.mxu0 0
        %2532 = vmatprep.subr.bf16.mxu0 0
        %2533 = vmatpush2.bf16.msra.mxu0 0
        %2534 = vmatprep.subr.bf16.mxu0 0
        %2535 = vmatpush2.bf16.msra.mxu0 0
        %2536 = vmatprep.mubr.bf16.mxu0 0
        %2537 = vmatmul.mubr.bf16.gmra.mxu0 %v2454
        %v2538 = vpop.f32.mrf.mxu0
        %v2539 = vadd.f32 %v2423, %v2538
        %v2540 = vpop.f32.mrf.mxu0
        %v2541 = vpop.f32.mrf.mxu0
        %v2542 = vpop.f32.mrf.mxu0
        %2543 = vdwg.mxu0
        %2544 = vst [vmem:[%s261] sm:$0xff] %v2539
        %p2545 = scmp.lt.s32.totalorder %s20, 1
        %s2546 = scalar_select %p2545, %s20, 1
        %s2547 = smul.addr %s2546, 8
        %s2548 = scalar_lea.vmem %s4, %s2547
        // Predicated region
        $region53: #{mhrta_forward.1} parent=35 // pred_check
          %p2549 = pneg %p127
        $region54: #{mhrta_forward.1} parent=35 // pred_check_branch
          %2551 = sbr.rel (%p2549) target = $region56
        $region55: #{mhrta_forward.1} parent=35 // pred_region
          _
        $region56: #{mhrta_forward.1} parent=35 // pred_fallthru
          _
      $region36: #{mhrta_forward.1} parent=5 // pred_fallthru
        _
      %p2552 = scmp.le.s32.totalorder 2, %s15
      // Predicated region
      $region57: #{mhrta_forward.1} parent=5 // pred_check
        %p2553 = pneg %p2552
      $region58: #{mhrta_forward.1} parent=5 // pred_check_branch
        %2555 = sbr.rel (%p2553) target = $region60
      $region59: #{mhrta_forward.1} parent=5 // pred_region
        %s2556 = ssub.s32 %s15, 2
        // Predicated region
        $region61: #{mhrta_forward.1} parent=59 // pred_check
          %p2557 = pneg %p133
        $region62: #{mhrta_forward.1} parent=59 // pred_check_branch
          %2559 = sbr.rel (%p2557) target = $region64
        $region63: #{mhrta_forward.1} parent=59 // pred_region
          %p2560 = scmp.lt.s32.totalorder %s21, 1
          %s2561 = scalar_select %p2560, %s21, 1
          %s2562 = smul.addr %s2561, 8
          %s2563 = scalar_lea.vmem %s4, %s2562
        $region64: #{mhrta_forward.1} parent=59 // pred_fallthru
          _
      $region60: #{mhrta_forward.1} parent=5 // pred_fallthru
        _
    $region6: #{mhrta_forward.1} parent=1 // loop_footer
      %s19 = sadd.s32 1, %s15
    $region7: #{mhrta_forward.1} parent=1 // loop_footer_branch
      %14 = sbr.rel target = $region3
    $region8: #{mhrta_forward.1} parent=1 // loop_exit
      _
    %2564 = vsyncpa [#allocation3], 1
    %s2565 = scalar_lea.sflag [#allocation3], 1
    %2566 = vsyncpa %s2565, 1
    %2567 = vsyncpa [#allocation5], 1
    %2568 = vsyncpa [#allocation8], 1

</llo_original>
